<compile_context>
chip_gen: v7x
topology: tpu7x:2x2x1
jax: 0.10.0
libtpu: 0.0.40
codegen_flags: <defaults>
</compile_context>

<pallas_src>
import jax
import jax.numpy as jnp
from jax import lax
from jax.experimental import pallas as pl
from jax.experimental.pallas import tpu as pltpu


def bilstm_policy_kernel(
    x_ref,        # (T, In)      f32  per-step LSTM inputs (emb ++ dummy)
    wih_ref,      # (In, 4*Hp)   f32  LSTMCell weight_ih^T, gate-blocks padded to Hp lanes
    whh_ref,      # (Hp, 4*Hp)   f32  LSTMCell weight_hh^T, padded
    b_ref,        # (1, 4*Hp)    f32  b_ih + b_hh, padded
    wh_head_ref,  # (Hp, NP)     f32  fused [actor | critic] head weights, h-part
    wc_head_ref,  # (Hp, NP)     f32  fused head weights, c-part
    b_head_ref,   # (1, NP)      f32  fused head bias
    h0_ref,       # (1, Hp)      f32  init_hidden(), zero-padded
    c0_ref,       # (1, Hp)      f32
    u_ref,        # (T, 1)       f32  uniform draws for multinomial(1) sampling
    logits_ref,   # (T, Tag)     f32  out: hidden_list (logits per step)
    maxact_ref,   # (T, 1)       i32  out: max_action_list
    maxlogp_ref,  # (T, 1)       f32  out: max_prob_list (log_softmax at argmax)
    sampact_ref,  # (T, 1)       i32  out: sample_action_list
    v_ref,        # (T, 1)       f32  out: V_list (critic values)
):
    T = x_ref.shape[0]
    Hp = h0_ref.shape[1]
    Tag = logits_ref.shape[1]
    NP = b_head_ref.shape[1]

    # ---- hoisted input projection: one M=T matmul, both biases folded in ----
    xw = jnp.dot(x_ref[...], wih_ref[...],
                 preferred_element_type=jnp.float32) + b_ref[...]      # (T, 4*Hp)

    whh = whh_ref[...]
    h = h0_ref[...]            # (1, Hp) loop-carried (no VMEM scratch)
    c = c0_ref[...]
    h_rows = []
    c_rows = []

    # T is small and static -> unrolled recurrence; only h @ Whh is serial.
    for k in range(T):
        gates = xw[k:k + 1, :] + jnp.dot(h, whh,
                                         preferred_element_type=jnp.float32)  # (1, 4*Hp)
        sg = jax.nn.sigmoid(gates)          # one EUP push for i/f/o
        tg = jnp.tanh(gates)                # one EUP push for g
        i_g = sg[:, 0 * Hp:1 * Hp]          # 128-lane aligned slices (PyTorch order i,f,g,o)
        f_g = sg[:, 1 * Hp:2 * Hp]
        g_g = tg[:, 2 * Hp:3 * Hp]
        o_g = sg[:, 3 * Hp:4 * Hp]
        c = f_g * c + i_g * g_g
        h = o_g * jnp.tanh(c)
        h_rows.append(h)
        c_rows.append(c)

    hs = jnp.concatenate(h_rows, axis=0)    # (T, Hp)
    cs = jnp.concatenate(c_rows, axis=0)    # (T, Hp)

    # ---- batched actor + critic head (fused into one padded output width) ----
    head = (jnp.dot(hs, wh_head_ref[...], preferred_element_type=jnp.float32)
            + jnp.dot(cs, wc_head_ref[...], preferred_element_type=jnp.float32)
            + b_head_ref[...])              # (T, NP): cols [0:Tag] logits, col Tag critic

    lane = lax.broadcasted_iota(jnp.int32, (T, NP), 1)
    valid = lane < Tag
    logit_m = jnp.where(valid, head, jnp.float32(-1e30))

    m = jnp.max(logit_m, axis=1, keepdims=True)            # (T, 1)
    e = jnp.exp(logit_m - m)                                # padded lanes underflow to 0
    s = jnp.sum(e, axis=1, keepdims=True)                   # (T, 1)
    prob = e * pl.reciprocal(s, approx=True)                # only feeds sampling compare

    # argmax (first index achieving the max, like torch.max(1)[1])
    is_max = logit_m >= m
    max_act = jnp.min(jnp.where(is_max, lane, NP), axis=1, keepdims=True)
    # log_softmax at the argmax == -log(sum exp(logit - max))  (exact log kept)
    max_logp = -jnp.log(s)

    # multinomial(1) via vectorized inverse CDF: cum = prob @ upper-tri ones
    row = lax.broadcasted_iota(jnp.int32, (NP, NP), 0)
    col = lax.broadcasted_iota(jnp.int32, (NP, NP), 1)
    tri = (row <= col).astype(jnp.float32)
    cum = jnp.dot(prob, tri, preferred_element_type=jnp.float32)   # (T, NP)
    samp = jnp.sum((cum < u_ref[...]).astype(jnp.int32), axis=1, keepdims=True)
    samp = jnp.minimum(samp, Tag - 1)

    v = head[:, Tag:Tag + 1]                                # (T, 1) critic column

    # ---- single dense store per output ----
    logits_ref[...] = head[:, :Tag]
    maxact_ref[...] = max_act.astype(jnp.int32)
    maxlogp_ref[...] = max_logp
    sampact_ref[...] = samp.astype(jnp.int32)
    v_ref[...] = v


def bilstm_forward(sentence, dummy_feats, params, h0, c0, uniforms):
    """Glue: embedding gather + param padding/fusion; hot path lives in the kernel."""
    # TODO(synk): embedding gather could move in-kernel via PrefetchScalarGridSpec +
    # pl.Element row gather; negligible at T=8 so kept as wrapper glue.
    emb = params["embedding"][sentence]                          # (T, E) gather
    x_seq = jnp.concatenate([emb, dummy_feats], axis=1).astype(jnp.float32)
    T = x_seq.shape[0]
    H = h0.shape[1]
    Tag = params["b_actor"].shape[0]
    Hp = max(128, ((H + 127) // 128) * 128)                      # lane-aligned hidden dim
    NP = 128                                                     # padded head width

    def expand_gate_cols(w_t):
        # (rows, 4H) -> (rows, 4*Hp): each gate block zero-padded to Hp lanes
        r = w_t.shape[0]
        w4 = w_t.reshape(r, 4, H)
        w4 = jnp.pad(w4, ((0, 0), (0, 0), (0, Hp - H)))
        return w4.reshape(r, 4 * Hp)

    wih = expand_gate_cols(params["w_ih"].T.astype(jnp.float32))             # (In, 4*Hp)
    whh = expand_gate_cols(params["w_hh"].T.astype(jnp.float32))             # (H, 4*Hp)
    whh = jnp.pad(whh, ((0, Hp - H), (0, 0)))                                # (Hp, 4*Hp)
    b_gates = expand_gate_cols(
        (params["b_ih"] + params["b_hh"]).reshape(1, -1).astype(jnp.float32))  # (1, 4*Hp)

    # fused head: columns 0..Tag-1 = actor logits, column Tag = critic value
    wh_head = jnp.concatenate([params["w_actor"][:, :H],
                               params["w_critic"][:, :H]], axis=0).T          # (H, Tag+1)
    wc_head = jnp.concatenate([params["w_actor"][:, H:],
                               params["w_critic"][:, H:]], axis=0).T          # (H, Tag+1)
    wh_head = jnp.pad(wh_head, ((0, Hp - H), (0, NP - (Tag + 1)))).astype(jnp.float32)
    wc_head = jnp.pad(wc_head, ((0, Hp - H), (0, NP - (Tag + 1)))).astype(jnp.float32)
    b_head = jnp.pad(
        jnp.concatenate([params["b_actor"], params["b_critic"]]).reshape(1, -1),
        ((0, 0), (0, NP - (Tag + 1)))).astype(jnp.float32)                    # (1, NP)

    h0p = jnp.pad(h0.astype(jnp.float32), ((0, 0), (0, Hp - H)))              # (1, Hp)
    c0p = jnp.pad(c0.astype(jnp.float32), ((0, 0), (0, Hp - H)))

    vmem = pl.BlockSpec(memory_space=pltpu.MemorySpace.VMEM)
    inputs = (
        x_seq, wih, whh, b_gates,
        wh_head, wc_head, b_head,
        h0p, c0p, uniforms.astype(jnp.float32),
    )
    out_shapes = (
        jax.ShapeDtypeStruct((T, Tag), jnp.float32),   # hidden_list (logits)
        jax.ShapeDtypeStruct((T, 1), jnp.int32),       # max_action_list
        jax.ShapeDtypeStruct((T, 1), jnp.float32),     # max_prob_list
        jax.ShapeDtypeStruct((T, 1), jnp.int32),       # sample_action_list
        jax.ShapeDtypeStruct((T, 1), jnp.float32),     # V_list
    )
    return pl.pallas_call(
        bilstm_policy_kernel,
        out_shape=out_shapes,
        in_specs=[vmem] * len(inputs),
        out_specs=tuple([vmem] * len(out_shapes)),
    )(*inputs)


if __name__ == "__main__":
    key = jax.random.PRNGKey(0)
    vocab_size, emb_dim, dummy_dim = 50, 20, 12
    hidden_dim, tagset_size, T = 32, 5, 8
    lstm_in = emb_dim + dummy_dim

    ks = jax.random.split(key, 12)
    params = {
        "embedding": jax.random.normal(ks[0], (vocab_size, emb_dim), jnp.float32),
        "w_ih": jax.random.normal(ks[1], (4 * hidden_dim, lstm_in), jnp.float32) * 0.1,
        "b_ih": jax.random.normal(ks[2], (4 * hidden_dim,), jnp.float32) * 0.1,
        "w_hh": jax.random.normal(ks[3], (4 * hidden_dim, hidden_dim), jnp.float32) * 0.1,
        "b_hh": jax.random.normal(ks[4], (4 * hidden_dim,), jnp.float32) * 0.1,
        "w_actor": jax.random.normal(ks[5], (tagset_size, 2 * hidden_dim), jnp.float32) * 0.1,
        "b_actor": jnp.zeros((tagset_size,), jnp.float32),
        "w_critic": jax.random.normal(ks[6], (1, 2 * hidden_dim), jnp.float32) * 0.1,
        "b_critic": jnp.zeros((1,), jnp.float32),
    }
    sentence = jax.random.randint(ks[7], (T,), 0, vocab_size)          # word ids
    dummy_feats = jax.random.normal(ks[8], (T, dummy_dim), jnp.float32)
    h0 = jax.random.normal(ks[9], (1, hidden_dim), jnp.float32)        # init_hidden()
    c0 = jax.random.normal(ks[10], (1, hidden_dim), jnp.float32)
    uniforms = jax.random.uniform(ks[11], (T, 1), jnp.float32)         # for multinomial(1)

    logits, max_act, max_logp, samp_act, values = jax.block_until_ready(
        bilstm_forward(sentence, dummy_feats, params, h0, c0, uniforms)
    )
    assert logits.shape == (T, tagset_size)
    assert max_act.shape == (T, 1) and samp_act.shape == (T, 1)
    assert max_logp.shape == (T, 1) and values.shape == (T, 1)
    print("KERNEL_OK")
</pallas_src>

<mosaic_0001>
module attributes {stable_mosaic.version = 11 : i64} {
  func.func @bilstm_policy_kernel(%arg0: memref<8x32xf32, #tpu.memory_space<vmem>>, %arg1: memref<32x512xf32, #tpu.memory_space<vmem>>, %arg2: memref<128x512xf32, #tpu.memory_space<vmem>>, %arg3: memref<1x512xf32, #tpu.memory_space<vmem>>, %arg4: memref<128x128xf32, #tpu.memory_space<vmem>>, %arg5: memref<128x128xf32, #tpu.memory_space<vmem>>, %arg6: memref<1x128xf32, #tpu.memory_space<vmem>>, %arg7: memref<1x128xf32, #tpu.memory_space<vmem>>, %arg8: memref<1x128xf32, #tpu.memory_space<vmem>>, %arg9: memref<8x1xf32, #tpu.memory_space<vmem>>, %arg10: memref<8x5xf32, #tpu.memory_space<vmem>>, %arg11: memref<8x1xi32, #tpu.memory_space<vmem>>, %arg12: memref<8x1xf32, #tpu.memory_space<vmem>>, %arg13: memref<8x1xi32, #tpu.memory_space<vmem>>, %arg14: memref<8x1xf32, #tpu.memory_space<vmem>>) attributes {dimension_semantics = [], scalar_prefetch = 0 : i64, scratch_operands = 0 : i64, tpu.core_type = #tpu.core_type<tc>} {
    %c0 = arith.constant 0 : index
    %c0_0 = arith.constant 0 : index
    %0 = vector.load %arg0[%c0, %c0_0] : memref<8x32xf32, #tpu.memory_space<vmem>>, vector<8x32xf32>
    %c0_1 = arith.constant 0 : index
    %c0_2 = arith.constant 0 : index
    %1 = vector.load %arg1[%c0_1, %c0_2] : memref<32x512xf32, #tpu.memory_space<vmem>>, vector<32x512xf32>
    %cst = arith.constant dense<0.000000e+00> : vector<8x512xf32>
    %2 = tpu.matmul %0, %1, %cst {dimension_numbers = #tpu.dot_dimension_numbers<[1], [0], [0], [1], [0, 0, 1, 1], [], []>} : vector<8x32xf32>, vector<32x512xf32>, vector<8x512xf32> -> vector<8x512xf32>
    %c0_3 = arith.constant 0 : index
    %c0_4 = arith.constant 0 : index
    %3 = vector.load %arg3[%c0_3, %c0_4] : memref<1x512xf32, #tpu.memory_space<vmem>>, vector<1x512xf32>
    %4 = vector.broadcast %3 : vector<1x512xf32> to vector<8x512xf32>
    %5 = arith.addf %2, %4 : vector<8x512xf32>
    %c0_5 = arith.constant 0 : index
    %c0_6 = arith.constant 0 : index
    %6 = vector.load %arg2[%c0_5, %c0_6] : memref<128x512xf32, #tpu.memory_space<vmem>>, vector<128x512xf32>
    %c0_7 = arith.constant 0 : index
    %c0_8 = arith.constant 0 : index
    %7 = vector.load %arg7[%c0_7, %c0_8] : memref<1x128xf32, #tpu.memory_space<vmem>>, vector<1x128xf32>
    %c0_9 = arith.constant 0 : index
    %c0_10 = arith.constant 0 : index
    %8 = vector.load %arg8[%c0_9, %c0_10] : memref<1x128xf32, #tpu.memory_space<vmem>>, vector<1x128xf32>
    %9 = vector.extract_strided_slice %5 {offsets = [0, 0], sizes = [1, 512], strides = [1, 1]} : vector<8x512xf32> to vector<1x512xf32>
    %cst_11 = arith.constant dense<0.000000e+00> : vector<1x512xf32>
    %10 = tpu.matmul %7, %6, %cst_11 {dimension_numbers = #tpu.dot_dimension_numbers<[1], [0], [0], [1], [0, 0, 1, 1], [], []>} : vector<1x128xf32>, vector<128x512xf32>, vector<1x512xf32> -> vector<1x512xf32>
    %11 = arith.addf %9, %10 : vector<1x512xf32>
    %12 = arith.negf %11 : vector<1x512xf32>
    %13 = math.exp %12 : vector<1x512xf32>
    %cst_12 = arith.constant 1.000000e+00 : f32
    %14 = vector.broadcast %cst_12 : f32 to vector<1x512xf32>
    %15 = arith.addf %14, %13 : vector<1x512xf32>
    %16 = arith.divf %14, %15 : vector<1x512xf32>
    %17 = math.tanh %11 : vector<1x512xf32>
    %18 = vector.extract_strided_slice %16 {offsets = [0, 0], sizes = [1, 128], strides = [1, 1]} : vector<1x512xf32> to vector<1x128xf32>
    %19 = vector.extract_strided_slice %16 {offsets = [0, 128], sizes = [1, 128], strides = [1, 1]} : vector<1x512xf32> to vector<1x128xf32>
    %20 = vector.extract_strided_slice %17 {offsets = [0, 256], sizes = [1, 128], strides = [1, 1]} : vector<1x512xf32> to vector<1x128xf32>
    %21 = vector.extract_strided_slice %16 {offsets = [0, 384], sizes = [1, 128], strides = [1, 1]} : vector<1x512xf32> to vector<1x128xf32>
    %22 = arith.mulf %19, %8 : vector<1x128xf32>
    %23 = arith.mulf %18, %20 : vector<1x128xf32>
    %24 = arith.addf %22, %23 : vector<1x128xf32>
    %25 = math.tanh %24 : vector<1x128xf32>
    %26 = arith.mulf %21, %25 : vector<1x128xf32>
    %27 = vector.extract_strided_slice %5 {offsets = [1, 0], sizes = [1, 512], strides = [1, 1]} : vector<8x512xf32> to vector<1x512xf32>
    %cst_13 = arith.constant dense<0.000000e+00> : vector<1x512xf32>
    %28 = tpu.matmul %26, %6, %cst_13 {dimension_numbers = #tpu.dot_dimension_numbers<[1], [0], [0], [1], [0, 0, 1, 1], [], []>} : vector<1x128xf32>, vector<128x512xf32>, vector<1x512xf32> -> vector<1x512xf32>
    %29 = arith.addf %27, %28 : vector<1x512xf32>
    %30 = arith.negf %29 : vector<1x512xf32>
    %31 = math.exp %30 : vector<1x512xf32>
    %cst_14 = arith.constant 1.000000e+00 : f32
    %32 = vector.broadcast %cst_14 : f32 to vector<1x512xf32>
    %33 = arith.addf %32, %31 : vector<1x512xf32>
    %34 = arith.divf %32, %33 : vector<1x512xf32>
    %35 = math.tanh %29 : vector<1x512xf32>
    %36 = vector.extract_strided_slice %34 {offsets = [0, 0], sizes = [1, 128], strides = [1, 1]} : vector<1x512xf32> to vector<1x128xf32>
    %37 = vector.extract_strided_slice %34 {offsets = [0, 128], sizes = [1, 128], strides = [1, 1]} : vector<1x512xf32> to vector<1x128xf32>
    %38 = vector.extract_strided_slice %35 {offsets = [0, 256], sizes = [1, 128], strides = [1, 1]} : vector<1x512xf32> to vector<1x128xf32>
    %39 = vector.extract_strided_slice %34 {offsets = [0, 384], sizes = [1, 128], strides = [1, 1]} : vector<1x512xf32> to vector<1x128xf32>
    %40 = arith.mulf %37, %24 : vector<1x128xf32>
    %41 = arith.mulf %36, %38 : vector<1x128xf32>
    %42 = arith.addf %40, %41 : vector<1x128xf32>
    %43 = math.tanh %42 : vector<1x128xf32>
    %44 = arith.mulf %39, %43 : vector<1x128xf32>
    %45 = vector.extract_strided_slice %5 {offsets = [2, 0], sizes = [1, 512], strides = [1, 1]} : vector<8x512xf32> to vector<1x512xf32>
    %cst_15 = arith.constant dense<0.000000e+00> : vector<1x512xf32>
    %46 = tpu.matmul %44, %6, %cst_15 {dimension_numbers = #tpu.dot_dimension_numbers<[1], [0], [0], [1], [0, 0, 1, 1], [], []>} : vector<1x128xf32>, vector<128x512xf32>, vector<1x512xf32> -> vector<1x512xf32>
    %47 = arith.addf %45, %46 : vector<1x512xf32>
    %48 = arith.negf %47 : vector<1x512xf32>
    %49 = math.exp %48 : vector<1x512xf32>
    %cst_16 = arith.constant 1.000000e+00 : f32
    %50 = vector.broadcast %cst_16 : f32 to vector<1x512xf32>
    %51 = arith.addf %50, %49 : vector<1x512xf32>
    %52 = arith.divf %50, %51 : vector<1x512xf32>
    %53 = math.tanh %47 : vector<1x512xf32>
    %54 = vector.extract_strided_slice %52 {offsets = [0, 0], sizes = [1, 128], strides = [1, 1]} : vector<1x512xf32> to vector<1x128xf32>
    %55 = vector.extract_strided_slice %52 {offsets = [0, 128], sizes = [1, 128], strides = [1, 1]} : vector<1x512xf32> to vector<1x128xf32>
    %56 = vector.extract_strided_slice %53 {offsets = [0, 256], sizes = [1, 128], strides = [1, 1]} : vector<1x512xf32> to vector<1x128xf32>
    %57 = vector.extract_strided_slice %52 {offsets = [0, 384], sizes = [1, 128], strides = [1, 1]} : vector<1x512xf32> to vector<1x128xf32>
    %58 = arith.mulf %55, %42 : vector<1x128xf32>
    %59 = arith.mulf %54, %56 : vector<1x128xf32>
    %60 = arith.addf %58, %59 : vector<1x128xf32>
    %61 = math.tanh %60 : vector<1x128xf32>
    %62 = arith.mulf %57, %61 : vector<1x128xf32>
    %63 = vector.extract_strided_slice %5 {offsets = [3, 0], sizes = [1, 512], strides = [1, 1]} : vector<8x512xf32> to vector<1x512xf32>
    %cst_17 = arith.constant dense<0.000000e+00> : vector<1x512xf32>
    %64 = tpu.matmul %62, %6, %cst_17 {dimension_numbers = #tpu.dot_dimension_numbers<[1], [0], [0], [1], [0, 0, 1, 1], [], []>} : vector<1x128xf32>, vector<128x512xf32>, vector<1x512xf32> -> vector<1x512xf32>
    %65 = arith.addf %63, %64 : vector<1x512xf32>
    %66 = arith.negf %65 : vector<1x512xf32>
    %67 = math.exp %66 : vector<1x512xf32>
    %cst_18 = arith.constant 1.000000e+00 : f32
    %68 = vector.broadcast %cst_18 : f32 to vector<1x512xf32>
    %69 = arith.addf %68, %67 : vector<1x512xf32>
    %70 = arith.divf %68, %69 : vector<1x512xf32>
    %71 = math.tanh %65 : vector<1x512xf32>
    %72 = vector.extract_strided_slice %70 {offsets = [0, 0], sizes = [1, 128], strides = [1, 1]} : vector<1x512xf32> to vector<1x128xf32>
    %73 = vector.extract_strided_slice %70 {offsets = [0, 128], sizes = [1, 128], strides = [1, 1]} : vector<1x512xf32> to vector<1x128xf32>
    %74 = vector.extract_strided_slice %71 {offsets = [0, 256], sizes = [1, 128], strides = [1, 1]} : vector<1x512xf32> to vector<1x128xf32>
    %75 = vector.extract_strided_slice %70 {offsets = [0, 384], sizes = [1, 128], strides = [1, 1]} : vector<1x512xf32> to vector<1x128xf32>
    %76 = arith.mulf %73, %60 : vector<1x128xf32>
    %77 = arith.mulf %72, %74 : vector<1x128xf32>
    %78 = arith.addf %76, %77 : vector<1x128xf32>
    %79 = math.tanh %78 : vector<1x128xf32>
    %80 = arith.mulf %75, %79 : vector<1x128xf32>
    %81 = vector.extract_strided_slice %5 {offsets = [4, 0], sizes = [1, 512], strides = [1, 1]} : vector<8x512xf32> to vector<1x512xf32>
    %cst_19 = arith.constant dense<0.000000e+00> : vector<1x512xf32>
    %82 = tpu.matmul %80, %6, %cst_19 {dimension_numbers = #tpu.dot_dimension_numbers<[1], [0], [0], [1], [0, 0, 1, 1], [], []>} : vector<1x128xf32>, vector<128x512xf32>, vector<1x512xf32> -> vector<1x512xf32>
    %83 = arith.addf %81, %82 : vector<1x512xf32>
    %84 = arith.negf %83 : vector<1x512xf32>
    %85 = math.exp %84 : vector<1x512xf32>
    %cst_20 = arith.constant 1.000000e+00 : f32
    %86 = vector.broadcast %cst_20 : f32 to vector<1x512xf32>
    %87 = arith.addf %86, %85 : vector<1x512xf32>
    %88 = arith.divf %86, %87 : vector<1x512xf32>
    %89 = math.tanh %83 : vector<1x512xf32>
    %90 = vector.extract_strided_slice %88 {offsets = [0, 0], sizes = [1, 128], strides = [1, 1]} : vector<1x512xf32> to vector<1x128xf32>
    %91 = vector.extract_strided_slice %88 {offsets = [0, 128], sizes = [1, 128], strides = [1, 1]} : vector<1x512xf32> to vector<1x128xf32>
    %92 = vector.extract_strided_slice %89 {offsets = [0, 256], sizes = [1, 128], strides = [1, 1]} : vector<1x512xf32> to vector<1x128xf32>
    %93 = vector.extract_strided_slice %88 {offsets = [0, 384], sizes = [1, 128], strides = [1, 1]} : vector<1x512xf32> to vector<1x128xf32>
    %94 = arith.mulf %91, %78 : vector<1x128xf32>
    %95 = arith.mulf %90, %92 : vector<1x128xf32>
    %96 = arith.addf %94, %95 : vector<1x128xf32>
    %97 = math.tanh %96 : vector<1x128xf32>
    %98 = arith.mulf %93, %97 : vector<1x128xf32>
    %99 = vector.extract_strided_slice %5 {offsets = [5, 0], sizes = [1, 512], strides = [1, 1]} : vector<8x512xf32> to vector<1x512xf32>
    %cst_21 = arith.constant dense<0.000000e+00> : vector<1x512xf32>
    %100 = tpu.matmul %98, %6, %cst_21 {dimension_numbers = #tpu.dot_dimension_numbers<[1], [0], [0], [1], [0, 0, 1, 1], [], []>} : vector<1x128xf32>, vector<128x512xf32>, vector<1x512xf32> -> vector<1x512xf32>
    %101 = arith.addf %99, %100 : vector<1x512xf32>
    %102 = arith.negf %101 : vector<1x512xf32>
    %103 = math.exp %102 : vector<1x512xf32>
    %cst_22 = arith.constant 1.000000e+00 : f32
    %104 = vector.broadcast %cst_22 : f32 to vector<1x512xf32>
    %105 = arith.addf %104, %103 : vector<1x512xf32>
    %106 = arith.divf %104, %105 : vector<1x512xf32>
    %107 = math.tanh %101 : vector<1x512xf32>
    %108 = vector.extract_strided_slice %106 {offsets = [0, 0], sizes = [1, 128], strides = [1, 1]} : vector<1x512xf32> to vector<1x128xf32>
    %109 = vector.extract_strided_slice %106 {offsets = [0, 128], sizes = [1, 128], strides = [1, 1]} : vector<1x512xf32> to vector<1x128xf32>
    %110 = vector.extract_strided_slice %107 {offsets = [0, 256], sizes = [1, 128], strides = [1, 1]} : vector<1x512xf32> to vector<1x128xf32>
    %111 = vector.extract_strided_slice %106 {offsets = [0, 384], sizes = [1, 128], strides = [1, 1]} : vector<1x512xf32> to vector<1x128xf32>
    %112 = arith.mulf %109, %96 : vector<1x128xf32>
    %113 = arith.mulf %108, %110 : vector<1x128xf32>
    %114 = arith.addf %112, %113 : vector<1x128xf32>
    %115 = math.tanh %114 : vector<1x128xf32>
    %116 = arith.mulf %111, %115 : vector<1x128xf32>
    %117 = vector.extract_strided_slice %5 {offsets = [6, 0], sizes = [1, 512], strides = [1, 1]} : vector<8x512xf32> to vector<1x512xf32>
    %cst_23 = arith.constant dense<0.000000e+00> : vector<1x512xf32>
    %118 = tpu.matmul %116, %6, %cst_23 {dimension_numbers = #tpu.dot_dimension_numbers<[1], [0], [0], [1], [0, 0, 1, 1], [], []>} : vector<1x128xf32>, vector<128x512xf32>, vector<1x512xf32> -> vector<1x512xf32>
    %119 = arith.addf %117, %118 : vector<1x512xf32>
    %120 = arith.negf %119 : vector<1x512xf32>
    %121 = math.exp %120 : vector<1x512xf32>
    %cst_24 = arith.constant 1.000000e+00 : f32
    %122 = vector.broadcast %cst_24 : f32 to vector<1x512xf32>
    %123 = arith.addf %122, %121 : vector<1x512xf32>
    %124 = arith.divf %122, %123 : vector<1x512xf32>
    %125 = math.tanh %119 : vector<1x512xf32>
    %126 = vector.extract_strided_slice %124 {offsets = [0, 0], sizes = [1, 128], strides = [1, 1]} : vector<1x512xf32> to vector<1x128xf32>
    %127 = vector.extract_strided_slice %124 {offsets = [0, 128], sizes = [1, 128], strides = [1, 1]} : vector<1x512xf32> to vector<1x128xf32>
    %128 = vector.extract_strided_slice %125 {offsets = [0, 256], sizes = [1, 128], strides = [1, 1]} : vector<1x512xf32> to vector<1x128xf32>
    %129 = vector.extract_strided_slice %124 {offsets = [0, 384], sizes = [1, 128], strides = [1, 1]} : vector<1x512xf32> to vector<1x128xf32>
    %130 = arith.mulf %127, %114 : vector<1x128xf32>
    %131 = arith.mulf %126, %128 : vector<1x128xf32>
    %132 = arith.addf %130, %131 : vector<1x128xf32>
    %133 = math.tanh %132 : vector<1x128xf32>
    %134 = arith.mulf %129, %133 : vector<1x128xf32>
    %135 = vector.extract_strided_slice %5 {offsets = [7, 0], sizes = [1, 512], strides = [1, 1]} : vector<8x512xf32> to vector<1x512xf32>
    %cst_25 = arith.constant dense<0.000000e+00> : vector<1x512xf32>
    %136 = tpu.matmul %134, %6, %cst_25 {dimension_numbers = #tpu.dot_dimension_numbers<[1], [0], [0], [1], [0, 0, 1, 1], [], []>} : vector<1x128xf32>, vector<128x512xf32>, vector<1x512xf32> -> vector<1x512xf32>
    %137 = arith.addf %135, %136 : vector<1x512xf32>
    %138 = arith.negf %137 : vector<1x512xf32>
    %139 = math.exp %138 : vector<1x512xf32>
    %cst_26 = arith.constant 1.000000e+00 : f32
    %140 = vector.broadcast %cst_26 : f32 to vector<1x512xf32>
    %141 = arith.addf %140, %139 : vector<1x512xf32>
    %142 = arith.divf %140, %141 : vector<1x512xf32>
    %143 = math.tanh %137 : vector<1x512xf32>
    %144 = vector.extract_strided_slice %142 {offsets = [0, 0], sizes = [1, 128], strides = [1, 1]} : vector<1x512xf32> to vector<1x128xf32>
    %145 = vector.extract_strided_slice %142 {offsets = [0, 128], sizes = [1, 128], strides = [1, 1]} : vector<1x512xf32> to vector<1x128xf32>
    %146 = vector.extract_strided_slice %143 {offsets = [0, 256], sizes = [1, 128], strides = [1, 1]} : vector<1x512xf32> to vector<1x128xf32>
    %147 = vector.extract_strided_slice %142 {offsets = [0, 384], sizes = [1, 128], strides = [1, 1]} : vector<1x512xf32> to vector<1x128xf32>
    %148 = arith.mulf %145, %132 : vector<1x128xf32>
    %149 = arith.mulf %144, %146 : vector<1x128xf32>
    %150 = arith.addf %148, %149 : vector<1x128xf32>
    %151 = math.tanh %150 : vector<1x128xf32>
    %152 = arith.mulf %147, %151 : vector<1x128xf32>
    %153 = tpu.concatenate %26, %44, %62, %80, %98, %116, %134, %152 in 0 : vector<1x128xf32>, vector<1x128xf32>, vector<1x128xf32>, vector<1x128xf32>, vector<1x128xf32>, vector<1x128xf32>, vector<1x128xf32>, vector<1x128xf32> -> vector<8x128xf32>
    %154 = tpu.concatenate %24, %42, %60, %78, %96, %114, %132, %150 in 0 : vector<1x128xf32>, vector<1x128xf32>, vector<1x128xf32>, vector<1x128xf32>, vector<1x128xf32>, vector<1x128xf32>, vector<1x128xf32>, vector<1x128xf32> -> vector<8x128xf32>
    %c0_27 = arith.constant 0 : index
    %c0_28 = arith.constant 0 : index
    %155 = vector.load %arg4[%c0_27, %c0_28] : memref<128x128xf32, #tpu.memory_space<vmem>>, vector<128x128xf32>
    %cst_29 = arith.constant dense<0.000000e+00> : vector<8x128xf32>
    %156 = tpu.matmul %153, %155, %cst_29 {dimension_numbers = #tpu.dot_dimension_numbers<[1], [0], [0], [1], [0, 0, 1, 1], [], []>} : vector<8x128xf32>, vector<128x128xf32>, vector<8x128xf32> -> vector<8x128xf32>
    %c0_30 = arith.constant 0 : index
    %c0_31 = arith.constant 0 : index
    %157 = vector.load %arg5[%c0_30, %c0_31] : memref<128x128xf32, #tpu.memory_space<vmem>>, vector<128x128xf32>
    %cst_32 = arith.constant dense<0.000000e+00> : vector<8x128xf32>
    %158 = tpu.matmul %154, %157, %cst_32 {dimension_numbers = #tpu.dot_dimension_numbers<[1], [0], [0], [1], [0, 0, 1, 1], [], []>} : vector<8x128xf32>, vector<128x128xf32>, vector<8x128xf32> -> vector<8x128xf32>
    %159 = arith.addf %156, %158 : vector<8x128xf32>
    %c0_33 = arith.constant 0 : index
    %c0_34 = arith.constant 0 : index
    %160 = vector.load %arg6[%c0_33, %c0_34] : memref<1x128xf32, #tpu.memory_space<vmem>>, vector<1x128xf32>
    %161 = vector.broadcast %160 : vector<1x128xf32> to vector<8x128xf32>
    %162 = arith.addf %159, %161 : vector<8x128xf32>
    %163 = tpu.iota {dimensions = array<i32: 1>} : vector<8x128xi32>
    %c5_i32 = arith.constant 5 : i32
    %164 = vector.broadcast %c5_i32 : i32 to vector<8x128xi32>
    %165 = arith.cmpi slt, %163, %164 : vector<8x128xi32>
    %cst_35 = arith.constant -1.000000e+30 : f32
    %166 = vector.broadcast %cst_35 : f32 to vector<8x128xf32>
    %167 = arith.select %165, %162, %166 : vector<8x128xi1>, vector<8x128xf32>
    %cst_36 = arith.constant dense<0xFF800000> : vector<8xf32>
    %168 = vector.multi_reduction <maximumf>, %167, %cst_36 [1] : vector<8x128xf32> to vector<8xf32>
    %169 = vector.shape_cast %168 : vector<8xf32> to vector<8x1xf32>
    %170 = vector.broadcast %169 : vector<8x1xf32> to vector<8x128xf32>
    %171 = arith.subf %167, %170 : vector<8x128xf32>
    %172 = math.exp %171 : vector<8x128xf32>
    %cst_37 = arith.constant dense<0.000000e+00> : vector<8xf32>
    %173 = vector.multi_reduction <add>, %172, %cst_37 [1] : vector<8x128xf32> to vector<8xf32>
    %174 = vector.shape_cast %173 : vector<8xf32> to vector<8x1xf32>
    %175 = tpu.reciprocal %174 {approx = true} : vector<8x1xf32> -> vector<8x1xf32>
    %176 = vector.broadcast %175 : vector<8x1xf32> to vector<8x128xf32>
    %177 = arith.mulf %172, %176 : vector<8x128xf32>
    %178 = vector.broadcast %169 : vector<8x1xf32> to vector<8x128xf32>
    %179 = arith.cmpf oge, %167, %178 : vector<8x128xf32>
    %c128_i32 = arith.constant 128 : i32
    %180 = vector.broadcast %c128_i32 : i32 to vector<8x128xi32>
    %181 = arith.select %179, %163, %180 : vector<8x128xi1>, vector<8x128xi32>
    %cst_38 = arith.constant dense<2147483647> : vector<8xi32>
    %182 = vector.multi_reduction <minsi>, %181, %cst_38 [1] : vector<8x128xi32> to vector<8xi32>
    %183 = vector.shape_cast %182 : vector<8xi32> to vector<8x1xi32>
    %184 = math.log %174 : vector<8x1xf32>
    %cst_39 = arith.constant 0.000000e+00 : f32
    %185 = vector.broadcast %cst_39 : f32 to vector<8x1xf32>
    %186 = arith.subf %185, %184 : vector<8x1xf32>
    %187 = tpu.iota {dimensions = array<i32: 0>} : vector<128x128xi32>
    %188 = tpu.iota {dimensions = array<i32: 1>} : vector<128x128xi32>
    %189 = arith.cmpi sle, %187, %188 : vector<128x128xi32>
    %190 = arith.extui %189 : vector<128x128xi1> to vector<128x128xi32>
    %191 = arith.sitofp %190 : vector<128x128xi32> to vector<128x128xf32>
    %cst_40 = arith.constant dense<0.000000e+00> : vector<8x128xf32>
    %192 = tpu.matmul %177, %191, %cst_40 {dimension_numbers = #tpu.dot_dimension_numbers<[1], [0], [0], [1], [0, 0, 1, 1], [], []>} : vector<8x128xf32>, vector<128x128xf32>, vector<8x128xf32> -> vector<8x128xf32>
    %c0_41 = arith.constant 0 : index
    %c0_42 = arith.constant 0 : index
    %193 = vector.load %arg9[%c0_41, %c0_42] : memref<8x1xf32, #tpu.memory_space<vmem>>, vector<8x1xf32>
    %194 = vector.broadcast %193 : vector<8x1xf32> to vector<8x128xf32>
    %195 = arith.cmpf olt, %192, %194 : vector<8x128xf32>
    %196 = arith.extui %195 : vector<8x128xi1> to vector<8x128xi32>
    %cst_43 = arith.constant dense<0> : vector<8xi32>
    %197 = vector.multi_reduction <add>, %196, %cst_43 [1] : vector<8x128xi32> to vector<8xi32>
    %198 = vector.shape_cast %197 : vector<8xi32> to vector<8x1xi32>
    %c4_i32 = arith.constant 4 : i32
    %199 = vector.broadcast %c4_i32 : i32 to vector<8x1xi32>
    %200 = arith.minsi %198, %199 : vector<8x1xi32>
    %201 = vector.extract_strided_slice %162 {offsets = [0, 5], sizes = [8, 1], strides = [1, 1]} : vector<8x128xf32> to vector<8x1xf32>
    %202 = vector.extract_strided_slice %162 {offsets = [0, 0], sizes = [8, 5], strides = [1, 1]} : vector<8x128xf32> to vector<8x5xf32>
    %c0_44 = arith.constant 0 : index
    %c0_45 = arith.constant 0 : index
    %203 = vector.load %arg10[%c0_44, %c0_45] : memref<8x5xf32, #tpu.memory_space<vmem>>, vector<8x5xf32>
    tpu.vector_store %arg10[%c0_44, %c0_45], %202 {strides = array<i32>} : memref<8x5xf32, #tpu.memory_space<vmem>>, vector<8x5xf32>,
    %c0_46 = arith.constant 0 : index
    %c0_47 = arith.constant 0 : index
    %204 = vector.load %arg11[%c0_46, %c0_47] : memref<8x1xi32, #tpu.memory_space<vmem>>, vector<8x1xi32>
    tpu.vector_store %arg11[%c0_46, %c0_47], %183 {strides = array<i32>} : memref<8x1xi32, #tpu.memory_space<vmem>>, vector<8x1xi32>,
    %c0_48 = arith.constant 0 : index
    %c0_49 = arith.constant 0 : index
    %205 = vector.load %arg12[%c0_48, %c0_49] : memref<8x1xf32, #tpu.memory_space<vmem>>, vector<8x1xf32>
    tpu.vector_store %arg12[%c0_48, %c0_49], %186 {strides = array<i32>} : memref<8x1xf32, #tpu.memory_space<vmem>>, vector<8x1xf32>,
    %c0_50 = arith.constant 0 : index
    %c0_51 = arith.constant 0 : index
    %206 = vector.load %arg13[%c0_50, %c0_51] : memref<8x1xi32, #tpu.memory_space<vmem>>, vector<8x1xi32>
    tpu.vector_store %arg13[%c0_50, %c0_51], %200 {strides = array<i32>} : memref<8x1xi32, #tpu.memory_space<vmem>>, vector<8x1xi32>,
    %c0_52 = arith.constant 0 : index
    %c0_53 = arith.constant 0 : index
    %207 = vector.load %arg14[%c0_52, %c0_53] : memref<8x1xf32, #tpu.memory_space<vmem>>, vector<8x1xf32>
    tpu.vector_store %arg14[%c0_52, %c0_53], %201 {strides = array<i32>} : memref<8x1xf32, #tpu.memory_space<vmem>>, vector<8x1xf32>,
    return
  }
}

</mosaic_0001>

<llo_original>
// kernel: tpu_custom_call.1
$region0: #{tpu_custom_call.1}
  #allocation0 [shape = 'u32[]', space=smem, size = 0x4, offset = 0x4, fixed_abs, tag = 'smem constant byte address 0x4 - core index']
  #allocation1 [shape = 'u32[144,128]{1,0:T(1,128)}', space=vmem, size = 0x12000, scoped, tag = 'internal scratch']
  %s0 = inlined_call_operand.vmem [shape: f32[8,32], index: 0, kind: input, shape index: {}]
  %s1 = inlined_call_operand.hbm [shape: f32[32,512], index: 1, kind: input, shape index: {}]
  %s2 = inlined_call_operand.hbm [shape: f32[128,512], index: 2, kind: input, shape index: {}]
  %s3 = inlined_call_operand.vmem [shape: f32[1,512], index: 3, kind: input, shape index: {}]
  %s4 = inlined_call_operand.hbm [shape: f32[128,128], index: 4, kind: input, shape index: {}]
  %s5 = inlined_call_operand.hbm [shape: f32[128,128], index: 5, kind: input, shape index: {}]
  %s6 = inlined_call_operand.vmem [shape: f32[1,128], index: 6, kind: input, shape index: {}]
  %s7 = inlined_call_operand.vmem [shape: f32[1,128], index: 7, kind: input, shape index: {}]
  %s8 = inlined_call_operand.vmem [shape: f32[1,128], index: 8, kind: input, shape index: {}]
  %s9 = inlined_call_operand.vmem [shape: f32[8,1], index: 9, kind: input, shape index: {}]
  %s10 = inlined_call_operand.hbm [shape: f32[8,5], index: 10, kind: output, shape index: {0}]
  %s11 = inlined_call_operand.vmem [shape: s32[8,1], index: 11, kind: output, shape index: {1}]
  %s12 = inlined_call_operand.vmem [shape: f32[8,1], index: 12, kind: output, shape index: {2}]
  %s13 = inlined_call_operand.vmem [shape: s32[8,1], index: 13, kind: output, shape index: {3}]
  %s14 = inlined_call_operand.vmem [shape: f32[8,1], index: 14, kind: output, shape index: {4}]
  %15 = xla_tuple %s10, %s11, %s12, %s13, %s14
  %s16 = sld [smem:[#allocation0]]
  $region98: #{tpu_custom_call.1} parent=0
    _
  %s18 = ssub.s32 1, %s16
  %s19 = scalar_select 0, %s18, %s16
  $region1: #{tpu_custom_call.1} parent=0
    #allocation2 [shape = 'u8[65536]{0}', space=vmem, size = 0x10000, scoped, tag = 'input window, operand 1, single buffered']
    #allocation3 [shape = 's32[1]{0}', space=sflag, size = 0x4, scoped, tag = 'scoped memory for tpu_custom_call.1']
    #allocation4 [shape = 's32[1]{0}', space=sflag, size = 0x4, scoped, tag = 'scoped memory for tpu_custom_call.1']
    #allocation5 [shape = 'u8[262144]{0}', space=vmem, size = 0x40000, scoped, tag = 'input window, operand 2, single buffered']
    #allocation6 [shape = 's32[1]{0}', space=sflag, size = 0x4, scoped, tag = 'scoped memory for tpu_custom_call.1']
    #allocation7 [shape = 'u8[65536]{0}', space=vmem, size = 0x10000, scoped, tag = 'input window, operand 4, single buffered']
    #allocation8 [shape = 'u8[65536]{0}', space=vmem, size = 0x10000, scoped, tag = 'input window, operand 5, single buffered']
    #allocation9 [shape = 's32[1]{0}', space=sflag, size = 0x4, scoped, tag = 'scoped memory for tpu_custom_call.1']
    #allocation10 [shape = 'u8[4096]{0}', space=vmem, size = 0x1000, scoped, tag = 'output window, operand 0, single buffered']
    %20 = vsyncpa [#allocation3], 0
    %21 = vsyncpa [#allocation6], 0
    %22 = vsyncpa [#allocation9], 0
    %23 = vsyncpa [#allocation4], 0
    // Predicated region
    $region2: #{tpu_custom_call.1} parent=1 // pred_check
      _
    $region3: #{tpu_custom_call.1} parent=1 // pred_check_branch
      %25 = sbr.rel (0) target = $region5
    $region4: #{tpu_custom_call.1} parent=1 // pred_region
      _
    $region5: #{tpu_custom_call.1} parent=1 // pred_fallthru
      _
    // Predicated region
    $region6: #{tpu_custom_call.1} parent=1 // pred_check
      _
    $region7: #{tpu_custom_call.1} parent=1 // pred_check_branch
      %27 = sbr.rel (0) target = $region9
    $region8: #{tpu_custom_call.1} parent=1 // pred_region
      %s29 = ssub.s32 2048, 2048
      %30 = vsyncadd [#allocation3], %s29
      %s31 = sshll.u32 [#allocation2], 4
      %s32 = int_to_ptr.vmem [resolvable:$true] %s31
      %37 = dma.hbm_to_vmem [thread:$0]  %s1, 2048, %s32, [#allocation3], 512, 512, 32
    $region9: #{tpu_custom_call.1} parent=1 // pred_fallthru
      _
    // Predicated region
    $region10: #{tpu_custom_call.1} parent=1 // pred_check
      _
    $region11: #{tpu_custom_call.1} parent=1 // pred_check_branch
      %39 = sbr.rel (0) target = $region13
    $region12: #{tpu_custom_call.1} parent=1 // pred_region
      %s41 = ssub.s32 8192, 8192
      %42 = vsyncadd [#allocation6], %s41
      %s43 = sshll.u32 [#allocation5], 4
      %s44 = int_to_ptr.vmem [resolvable:$true] %s43
      %49 = dma.hbm_to_vmem [thread:$0]  %s2, 8192, %s44, [#allocation6], 512, 512, 32
    $region13: #{tpu_custom_call.1} parent=1 // pred_fallthru
      _
    // Predicated region
    $region14: #{tpu_custom_call.1} parent=1 // pred_check
      _
    $region15: #{tpu_custom_call.1} parent=1 // pred_check_branch
      %51 = sbr.rel (0) target = $region17
    $region16: #{tpu_custom_call.1} parent=1 // pred_region
      _
    $region17: #{tpu_custom_call.1} parent=1 // pred_fallthru
      _
    // Predicated region
    $region18: #{tpu_custom_call.1} parent=1 // pred_check
      _
    $region19: #{tpu_custom_call.1} parent=1 // pred_check_branch
      %53 = sbr.rel (0) target = $region21
    $region20: #{tpu_custom_call.1} parent=1 // pred_region
      %s55 = ssub.s32 2048, 2048
      %56 = vsyncadd [#allocation6], %s55
      %s57 = sshll.u32 [#allocation7], 4
      %s58 = int_to_ptr.vmem [resolvable:$true] %s57
      %63 = dma.hbm_to_vmem [thread:$0]  %s4, 2048, %s58, [#allocation6], 128, 128, 8
    $region21: #{tpu_custom_call.1} parent=1 // pred_fallthru
      _
    // Predicated region
    $region22: #{tpu_custom_call.1} parent=1 // pred_check
      _
    $region23: #{tpu_custom_call.1} parent=1 // pred_check_branch
      %65 = sbr.rel (0) target = $region25
    $region24: #{tpu_custom_call.1} parent=1 // pred_region
      %s67 = ssub.s32 2048, 2048
      %68 = vsyncadd [#allocation9], %s67
      %s69 = sshll.u32 [#allocation8], 4
      %s70 = int_to_ptr.vmem [resolvable:$true] %s69
      %75 = dma.hbm_to_vmem [thread:$0]  %s5, 2048, %s70, [#allocation9], 128, 128, 8
    $region25: #{tpu_custom_call.1} parent=1 // pred_fallthru
      _
    // Predicated region
    $region26: #{tpu_custom_call.1} parent=1 // pred_check
      _
    $region27: #{tpu_custom_call.1} parent=1 // pred_check_branch
      %77 = sbr.rel (0) target = $region29
    $region28: #{tpu_custom_call.1} parent=1 // pred_region
      _
    $region29: #{tpu_custom_call.1} parent=1 // pred_fallthru
      _
    // Predicated region
    $region30: #{tpu_custom_call.1} parent=1 // pred_check
      _
    $region31: #{tpu_custom_call.1} parent=1 // pred_check_branch
      %79 = sbr.rel (0) target = $region33
    $region32: #{tpu_custom_call.1} parent=1 // pred_region
      _
    $region33: #{tpu_custom_call.1} parent=1 // pred_fallthru
      _
    // Predicated region
    $region34: #{tpu_custom_call.1} parent=1 // pred_check
      _
    $region35: #{tpu_custom_call.1} parent=1 // pred_check_branch
      %81 = sbr.rel (0) target = $region37
    $region36: #{tpu_custom_call.1} parent=1 // pred_region
      _
    $region37: #{tpu_custom_call.1} parent=1 // pred_fallthru
      _
    // Predicated region
    $region38: #{tpu_custom_call.1} parent=1 // pred_check
      _
    $region39: #{tpu_custom_call.1} parent=1 // pred_check_branch
      %83 = sbr.rel (0) target = $region41
    $region40: #{tpu_custom_call.1} parent=1 // pred_region
      _
    $region41: #{tpu_custom_call.1} parent=1 // pred_fallthru
      _
    // Predicated region
    $region42: #{tpu_custom_call.1} parent=1 // pred_check
      _
    $region43: #{tpu_custom_call.1} parent=1 // pred_check_branch
      %85 = sbr.rel (0) target = $region45
    $region44: #{tpu_custom_call.1} parent=1 // pred_region
      %86 = dma.done [#allocation3], 2048
    $region45: #{tpu_custom_call.1} parent=1 // pred_fallthru
      _
    // Predicated region
    $region46: #{tpu_custom_call.1} parent=1 // pred_check
      _
    $region47: #{tpu_custom_call.1} parent=1 // pred_check_branch
      %88 = sbr.rel (0) target = $region49
    $region48: #{tpu_custom_call.1} parent=1 // pred_region
      %89 = dma.done [#allocation6], 8192
    $region49: #{tpu_custom_call.1} parent=1 // pred_fallthru
      _
    // Predicated region
    $region50: #{tpu_custom_call.1} parent=1 // pred_check
      _
    $region51: #{tpu_custom_call.1} parent=1 // pred_check_branch
      %91 = sbr.rel (0) target = $region53
    $region52: #{tpu_custom_call.1} parent=1 // pred_region
      %92 = dma.done [#allocation6], 2048
    $region53: #{tpu_custom_call.1} parent=1 // pred_fallthru
      _
    // Predicated region
    $region54: #{tpu_custom_call.1} parent=1 // pred_check
      _
    $region55: #{tpu_custom_call.1} parent=1 // pred_check_branch
      %94 = sbr.rel (0) target = $region57
    $region56: #{tpu_custom_call.1} parent=1 // pred_region
      %95 = dma.done [#allocation9], 2048
    $region57: #{tpu_custom_call.1} parent=1 // pred_fallthru
      _
    %v96 = vld [vmem:[%s0] sm:$0xff]
    %v97 = vld [vmem:[#allocation2] sm:$0xff]
    %v98 = vld [vmem:[#allocation2 + $0x8] sm:$0xff]
    %v99 = vld [vmem:[#allocation2 + $0x10] sm:$0xff]
    %v100 = vld [vmem:[#allocation2 + $0x18] sm:$0xff]
    %v101 = vld [vmem:[#allocation2 + $0x20] sm:$0xff]
    %v102 = vld [vmem:[#allocation2 + $0x28] sm:$0xff]
    %v103 = vld [vmem:[#allocation2 + $0x30] sm:$0xff]
    %v104 = vld [vmem:[#allocation2 + $0x38] sm:$0xff]
    %v105 = vld [vmem:[#allocation2 + $0x40] sm:$0xff]
    %v106 = vld [vmem:[#allocation2 + $0x48] sm:$0xff]
    %v107 = vld [vmem:[#allocation2 + $0x50] sm:$0xff]
    %v108 = vld [vmem:[#allocation2 + $0x58] sm:$0xff]
    %v109 = vld [vmem:[#allocation2 + $0x60] sm:$0xff]
    %v110 = vld [vmem:[#allocation2 + $0x68] sm:$0xff]
    %v111 = vld [vmem:[#allocation2 + $0x70] sm:$0xff]
    %v112 = vld [vmem:[#allocation2 + $0x78] sm:$0xff]
    %v113 = vld [vmem:[%s3] sm:$0xf]
    %v115 = vlaneseq
    %v116 = vshrl.u32 %v115, 7
    %v117 = vsub.s32 0, %v116
    %v118 = vrot.slane %v113, %v117
    %v119 = vlaneseq
    %v120 = vshrl.u32 %v119, 7
    %v121 = vsub.s32 1, %v120
    %v122 = vrot.slane %v113, %v121
    %v123 = vlaneseq
    %v124 = vshrl.u32 %v123, 7
    %v125 = vsub.s32 2, %v124
    %v126 = vrot.slane %v113, %v125
    %v127 = vlaneseq
    %v128 = vshrl.u32 %v127, 7
    %v129 = vsub.s32 3, %v128
    %v130 = vrot.slane %v113, %v129
    %vm135 = vcmask 261120
    %v137 = vsel %vm135, %v96, 0
    %139 = vmatprep.subr.mxu0 %v98
    %140 = vmatpush1.msra.mxu0 %v97
    %141 = vmatprep.subr.mxu0 %v102
    %142 = vmatpush1.msra.mxu0 %v101
    %143 = vmatprep.subr.mxu0 %v106
    %144 = vmatpush1.msra.mxu0 %v105
    %145 = vmatprep.subr.mxu0 %v110
    %146 = vmatpush1.msra.mxu0 %v109
    %147 = vmatprep.subr.mxu0 0.0
    %148 = vmatpush1.msra.mxu0 0.0
    %149 = vmatprep.subr.mxu0 0.0
    %150 = vmatpush1.msra.mxu0 0.0
    %151 = vmatprep.subr.mxu0 0.0
    %152 = vmatpush1.msra.mxu0 0.0
    %153 = vmatprep.subr.mxu0 0.0
    %154 = vmatpush1.msra.mxu0 0.0
    %155 = vmatprep.subr.mxu0 0.0
    %156 = vmatpush1.msra.mxu0 0.0
    %157 = vmatprep.subr.mxu0 0.0
    %158 = vmatpush1.msra.mxu0 0.0
    %159 = vmatprep.subr.mxu0 0.0
    %160 = vmatpush1.msra.mxu0 0.0
    %161 = vmatprep.subr.mxu0 0.0
    %162 = vmatpush1.msra.mxu0 0.0
    %163 = vmatprep.subr.mxu0 0.0
    %164 = vmatpush1.msra.mxu0 0.0
    %165 = vmatprep.subr.mxu0 0.0
    %166 = vmatpush1.msra.mxu0 0.0
    %167 = vmatprep.subr.mxu0 0.0
    %168 = vmatpush1.msra.mxu0 0.0
    %169 = vmatprep.subr.mxu0 0.0
    %170 = vmatpush1.msra.mxu0 0.0
    %171 = vmatprep.subr.mxu0 0.0
    %172 = vmatpush1.msra.mxu0 0.0
    %173 = vmatprep.subr.mxu0 0.0
    %174 = vmatpush1.msra.mxu0 0.0
    %175 = vmatprep.subr.mxu0 0.0
    %176 = vmatpush1.msra.mxu0 0.0
    %177 = vmatprep.subr.mxu0 0.0
    %178 = vmatpush1.msra.mxu0 0.0
    %179 = vmatprep.subr.mxu0 0.0
    %180 = vmatpush1.msra.mxu0 0.0
    %181 = vmatprep.subr.mxu0 0.0
    %182 = vmatpush1.msra.mxu0 0.0
    %183 = vmatprep.subr.mxu0 0.0
    %184 = vmatpush1.msra.mxu0 0.0
    %185 = vmatprep.subr.mxu0 0.0
    %186 = vmatpush1.msra.mxu0 0.0
    %187 = vmatprep.subr.mxu0 0.0
    %188 = vmatpush1.msra.mxu0 0.0
    %189 = vmatprep.subr.mxu0 0.0
    %190 = vmatpush1.msra.mxu0 0.0
    %191 = vmatprep.subr.mxu0 0.0
    %192 = vmatpush1.msra.mxu0 0.0
    %193 = vmatprep.subr.mxu0 0.0
    %194 = vmatpush1.msra.mxu0 0.0
    %195 = vmatprep.subr.mxu0 0.0
    %196 = vmatpush1.msra.mxu0 0.0
    %197 = vmatprep.subr.mxu0 0.0
    %198 = vmatpush1.msra.mxu0 0.0
    %199 = vmatprep.subr.mxu0 0.0
    %200 = vmatpush1.msra.mxu0 0.0
    %201 = vmatprep.subr.mxu0 0.0
    %202 = vmatpush1.msra.mxu0 0.0
    %203 = vmatprep.mubr.f32.mxu0 0.0
    %204 = vmatmul.mubr.f32.gmra.mrb[0].mxu0 %v137
    %v205 = vpop.f32.mrb[0].mxu0
    %v206 = vadd.f32 %v118, %v205
    %v207 = vpop.f32.mrb[0].mxu0
    %v208 = vadd.f32 %v122, %v207
    %209 = vdwg.mxu0
    %210 = vmatprep.subr.mxu0 %v100
    %211 = vmatpush1.msra.mxu0 %v99
    %212 = vmatprep.subr.mxu0 %v104
    %213 = vmatpush1.msra.mxu0 %v103
    %214 = vmatprep.subr.mxu0 %v108
    %215 = vmatpush1.msra.mxu0 %v107
    %216 = vmatprep.subr.mxu0 %v112
    %217 = vmatpush1.msra.mxu0 %v111
    %218 = vmatprep.subr.mxu0 0.0
    %219 = vmatpush1.msra.mxu0 0.0
    %220 = vmatprep.subr.mxu0 0.0
    %221 = vmatpush1.msra.mxu0 0.0
    %222 = vmatprep.subr.mxu0 0.0
    %223 = vmatpush1.msra.mxu0 0.0
    %224 = vmatprep.subr.mxu0 0.0
    %225 = vmatpush1.msra.mxu0 0.0
    %226 = vmatprep.subr.mxu0 0.0
    %227 = vmatpush1.msra.mxu0 0.0
    %228 = vmatprep.subr.mxu0 0.0
    %229 = vmatpush1.msra.mxu0 0.0
    %230 = vmatprep.subr.mxu0 0.0
    %231 = vmatpush1.msra.mxu0 0.0
    %232 = vmatprep.subr.mxu0 0.0
    %233 = vmatpush1.msra.mxu0 0.0
    %234 = vmatprep.subr.mxu0 0.0
    %235 = vmatpush1.msra.mxu0 0.0
    %236 = vmatprep.subr.mxu0 0.0
    %237 = vmatpush1.msra.mxu0 0.0
    %238 = vmatprep.subr.mxu0 0.0
    %239 = vmatpush1.msra.mxu0 0.0
    %240 = vmatprep.subr.mxu0 0.0
    %241 = vmatpush1.msra.mxu0 0.0
    %242 = vmatprep.subr.mxu0 0.0
    %243 = vmatpush1.msra.mxu0 0.0
    %244 = vmatprep.subr.mxu0 0.0
    %245 = vmatpush1.msra.mxu0 0.0
    %246 = vmatprep.subr.mxu0 0.0
    %247 = vmatpush1.msra.mxu0 0.0
    %248 = vmatprep.subr.mxu0 0.0
    %249 = vmatpush1.msra.mxu0 0.0
    %250 = vmatprep.subr.mxu0 0.0
    %251 = vmatpush1.msra.mxu0 0.0
    %252 = vmatprep.subr.mxu0 0.0
    %253 = vmatpush1.msra.mxu0 0.0
    %254 = vmatprep.subr.mxu0 0.0
    %255 = vmatpush1.msra.mxu0 0.0
    %256 = vmatprep.subr.mxu0 0.0
    %257 = vmatpush1.msra.mxu0 0.0
    %258 = vmatprep.subr.mxu0 0.0
    %259 = vmatpush1.msra.mxu0 0.0
    %260 = vmatprep.subr.mxu0 0.0
    %261 = vmatpush1.msra.mxu0 0.0
    %262 = vmatprep.subr.mxu0 0.0
    %263 = vmatpush1.msra.mxu0 0.0
    %264 = vmatprep.subr.mxu0 0.0
    %265 = vmatpush1.msra.mxu0 0.0
    %266 = vmatprep.subr.mxu0 0.0
    %267 = vmatpush1.msra.mxu0 0.0
    %268 = vmatprep.subr.mxu0 0.0
    %269 = vmatpush1.msra.mxu0 0.0
    %270 = vmatprep.subr.mxu0 0.0
    %271 = vmatpush1.msra.mxu0 0.0
    %272 = vmatprep.subr.mxu0 0.0
    %273 = vmatpush1.msra.mxu0 0.0
    %274 = vmatprep.mubr.f32.mxu0 0.0
    %275 = vmatmul.mubr.f32.gmra.mrb[0].mxu0 %v137
    %v276 = vpop.f32.mrb[0].mxu0
    %v277 = vadd.f32 %v126, %v276
    %v278 = vpop.f32.mrb[0].mxu0
    %v279 = vadd.f32 %v130, %v278
    %280 = vdwg.mxu0
    %v281 = vld [vmem:[#allocation5] sm:$0xff]
    %v282 = vld [vmem:[#allocation5 + $0x8] sm:$0xff]
    %v283 = vld [vmem:[#allocation5 + $0x10] sm:$0xff]
    %v284 = vld [vmem:[#allocation5 + $0x18] sm:$0xff]
    %v285 = vld [vmem:[#allocation5 + $0x20] sm:$0xff]
    %v286 = vld [vmem:[#allocation5 + $0x28] sm:$0xff]
    %v287 = vld [vmem:[#allocation5 + $0x30] sm:$0xff]
    %v288 = vld [vmem:[#allocation5 + $0x38] sm:$0xff]
    %v289 = vld [vmem:[#allocation5 + $0x40] sm:$0xff]
    %v290 = vld [vmem:[#allocation5 + $0x48] sm:$0xff]
    %v291 = vld [vmem:[#allocation5 + $0x50] sm:$0xff]
    %v292 = vld [vmem:[#allocation5 + $0x58] sm:$0xff]
    %v293 = vld [vmem:[#allocation5 + $0x60] sm:$0xff]
    %v294 = vld [vmem:[#allocation5 + $0x68] sm:$0xff]
    %v295 = vld [vmem:[#allocation5 + $0x70] sm:$0xff]
    %v296 = vld [vmem:[#allocation5 + $0x78] sm:$0xff]
    %v297 = vld [vmem:[#allocation5 + $0x80] sm:$0xff]
    %v298 = vld [vmem:[#allocation5 + $0x88] sm:$0xff]
    %v299 = vld [vmem:[#allocation5 + $0x90] sm:$0xff]
    %v300 = vld [vmem:[#allocation5 + $0x98] sm:$0xff]
    %v301 = vld [vmem:[#allocation5 + $0xa0] sm:$0xff]
    %v302 = vld [vmem:[#allocation5 + $0xa8] sm:$0xff]
    %v303 = vld [vmem:[#allocation5 + $0xb0] sm:$0xff]
    %v304 = vld [vmem:[#allocation5 + $0xb8] sm:$0xff]
    %v305 = vld [vmem:[#allocation5 + $0xc0] sm:$0xff]
    %v306 = vld [vmem:[#allocation5 + $0xc8] sm:$0xff]
    %v307 = vld [vmem:[#allocation5 + $0xd0] sm:$0xff]
    %v308 = vld [vmem:[#allocation5 + $0xd8] sm:$0xff]
    %v309 = vld [vmem:[#allocation5 + $0xe0] sm:$0xff]
    %v310 = vld [vmem:[#allocation5 + $0xe8] sm:$0xff]
    %v311 = vld [vmem:[#allocation5 + $0xf0] sm:$0xff]
    %v312 = vld [vmem:[#allocation5 + $0xf8] sm:$0xff]
    %v313 = vld [vmem:[#allocation5 + $0x100] sm:$0xff]
    %v314 = vld [vmem:[#allocation5 + $0x108] sm:$0xff]
    %v315 = vld [vmem:[#allocation5 + $0x110] sm:$0xff]
    %v316 = vld [vmem:[#allocation5 + $0x118] sm:$0xff]
    %v317 = vld [vmem:[#allocation5 + $0x120] sm:$0xff]
    %v318 = vld [vmem:[#allocation5 + $0x128] sm:$0xff]
    %v319 = vld [vmem:[#allocation5 + $0x130] sm:$0xff]
    %v320 = vld [vmem:[#allocation5 + $0x138] sm:$0xff]
    %v321 = vld [vmem:[#allocation5 + $0x140] sm:$0xff]
    %v322 = vld [vmem:[#allocation5 + $0x148] sm:$0xff]
    %v323 = vld [vmem:[#allocation5 + $0x150] sm:$0xff]
    %v324 = vld [vmem:[#allocation5 + $0x158] sm:$0xff]
    %v325 = vld [vmem:[#allocation5 + $0x160] sm:$0xff]
    %v326 = vld [vmem:[#allocation5 + $0x168] sm:$0xff]
    %v327 = vld [vmem:[#allocation5 + $0x170] sm:$0xff]
    %v328 = vld [vmem:[#allocation5 + $0x178] sm:$0xff]
    %v329 = vld [vmem:[#allocation5 + $0x180] sm:$0xff]
    %v330 = vld [vmem:[#allocation5 + $0x188] sm:$0xff]
    %v331 = vld [vmem:[#allocation5 + $0x190] sm:$0xff]
    %v332 = vld [vmem:[#allocation5 + $0x198] sm:$0xff]
    %v333 = vld [vmem:[#allocation5 + $0x1a0] sm:$0xff]
    %v334 = vld [vmem:[#allocation5 + $0x1a8] sm:$0xff]
    %v335 = vld [vmem:[#allocation5 + $0x1b0] sm:$0xff]
    %v336 = vld [vmem:[#allocation5 + $0x1b8] sm:$0xff]
    %v337 = vld [vmem:[#allocation5 + $0x1c0] sm:$0xff]
    %v338 = vld [vmem:[#allocation5 + $0x1c8] sm:$0xff]
    %v339 = vld [vmem:[#allocation5 + $0x1d0] sm:$0xff]
    %v340 = vld [vmem:[#allocation5 + $0x1d8] sm:$0xff]
    %v341 = vld [vmem:[#allocation5 + $0x1e0] sm:$0xff]
    %v342 = vld [vmem:[#allocation5 + $0x1e8] sm:$0xff]
    %v343 = vld [vmem:[#allocation5 + $0x1f0] sm:$0xff]
    %v344 = vld [vmem:[#allocation5 + $0x1f8] sm:$0xff]
    %v345 = vld [vmem:[%s7] sm:$0x1]
    %v346 = vld [vmem:[%s8] sm:$0x1]
    %347 = vmatprep.subr.mxu0 %v282
    %348 = vmatpush1.msra.mxu0 %v281
    %349 = vmatprep.subr.mxu0 %v286
    %350 = vmatpush1.msra.mxu0 %v285
    %351 = vmatprep.subr.mxu0 %v290
    %352 = vmatpush1.msra.mxu0 %v289
    %353 = vmatprep.subr.mxu0 %v294
    %354 = vmatpush1.msra.mxu0 %v293
    %355 = vmatprep.subr.mxu0 %v298
    %356 = vmatpush1.msra.mxu0 %v297
    %357 = vmatprep.subr.mxu0 %v302
    %358 = vmatpush1.msra.mxu0 %v301
    %359 = vmatprep.subr.mxu0 %v306
    %360 = vmatpush1.msra.mxu0 %v305
    %361 = vmatprep.subr.mxu0 %v310
    %362 = vmatpush1.msra.mxu0 %v309
    %363 = vmatprep.subr.mxu0 %v314
    %364 = vmatpush1.msra.mxu0 %v313
    %365 = vmatprep.subr.mxu0 %v318
    %366 = vmatpush1.msra.mxu0 %v317
    %367 = vmatprep.subr.mxu0 %v322
    %368 = vmatpush1.msra.mxu0 %v321
    %369 = vmatprep.subr.mxu0 %v326
    %370 = vmatpush1.msra.mxu0 %v325
    %371 = vmatprep.subr.mxu0 %v330
    %372 = vmatpush1.msra.mxu0 %v329
    %373 = vmatprep.subr.mxu0 %v334
    %374 = vmatpush1.msra.mxu0 %v333
    %375 = vmatprep.subr.mxu0 %v338
    %376 = vmatpush1.msra.mxu0 %v337
    %377 = vmatprep.subr.mxu0 %v342
    %378 = vmatpush1.msra.mxu0 %v341
    %379 = vmatprep.subr.mxu0 0.0
    %380 = vmatpush1.msra.mxu0 0.0
    %381 = vmatprep.subr.mxu0 0.0
    %382 = vmatpush1.msra.mxu0 0.0
    %383 = vmatprep.subr.mxu0 0.0
    %384 = vmatpush1.msra.mxu0 0.0
    %385 = vmatprep.subr.mxu0 0.0
    %386 = vmatpush1.msra.mxu0 0.0
    %387 = vmatprep.subr.mxu0 0.0
    %388 = vmatpush1.msra.mxu0 0.0
    %389 = vmatprep.subr.mxu0 0.0
    %390 = vmatpush1.msra.mxu0 0.0
    %391 = vmatprep.subr.mxu0 0.0
    %392 = vmatpush1.msra.mxu0 0.0
    %393 = vmatprep.subr.mxu0 0.0
    %394 = vmatpush1.msra.mxu0 0.0
    %395 = vmatprep.subr.mxu0 0.0
    %396 = vmatpush1.msra.mxu0 0.0
    %397 = vmatprep.subr.mxu0 0.0
    %398 = vmatpush1.msra.mxu0 0.0
    %399 = vmatprep.subr.mxu0 0.0
    %400 = vmatpush1.msra.mxu0 0.0
    %401 = vmatprep.subr.mxu0 0.0
    %402 = vmatpush1.msra.mxu0 0.0
    %403 = vmatprep.subr.mxu0 0.0
    %404 = vmatpush1.msra.mxu0 0.0
    %405 = vmatprep.subr.mxu0 0.0
    %406 = vmatpush1.msra.mxu0 0.0
    %407 = vmatprep.subr.mxu0 0.0
    %408 = vmatpush1.msra.mxu0 0.0
    %409 = vmatprep.subr.mxu0 0.0
    %410 = vmatpush1.msra.mxu0 0.0
    %411 = vmatprep.mubr.f32.mxu0 0.0
    %412 = vmatmul.mubr.f32.gmra.mrb[0].mxu0 %v345
    %v413 = vpop.f32.mrb[0].mxu0
    %v414 = vadd.f32 0.0, %v413
    %v415 = vpop.f32.mrb[0].mxu0
    %v416 = vadd.f32 0.0, %v415
    %417 = vdwg.mxu0
    %418 = vmatprep.subr.mxu0 %v284
    %419 = vmatpush1.msra.mxu0 %v283
    %420 = vmatprep.subr.mxu0 %v288
    %421 = vmatpush1.msra.mxu0 %v287
    %422 = vmatprep.subr.mxu0 %v292
    %423 = vmatpush1.msra.mxu0 %v291
    %424 = vmatprep.subr.mxu0 %v296
    %425 = vmatpush1.msra.mxu0 %v295
    %426 = vmatprep.subr.mxu0 %v300
    %427 = vmatpush1.msra.mxu0 %v299
    %428 = vmatprep.subr.mxu0 %v304
    %429 = vmatpush1.msra.mxu0 %v303
    %430 = vmatprep.subr.mxu0 %v308
    %431 = vmatpush1.msra.mxu0 %v307
    %432 = vmatprep.subr.mxu0 %v312
    %433 = vmatpush1.msra.mxu0 %v311
    %434 = vmatprep.subr.mxu0 %v316
    %435 = vmatpush1.msra.mxu0 %v315
    %436 = vmatprep.subr.mxu0 %v320
    %437 = vmatpush1.msra.mxu0 %v319
    %438 = vmatprep.subr.mxu0 %v324
    %439 = vmatpush1.msra.mxu0 %v323
    %440 = vmatprep.subr.mxu0 %v328
    %441 = vmatpush1.msra.mxu0 %v327
    %442 = vmatprep.subr.mxu0 %v332
    %443 = vmatpush1.msra.mxu0 %v331
    %444 = vmatprep.subr.mxu0 %v336
    %445 = vmatpush1.msra.mxu0 %v335
    %446 = vmatprep.subr.mxu0 %v340
    %447 = vmatpush1.msra.mxu0 %v339
    %448 = vmatprep.subr.mxu0 %v344
    %449 = vmatpush1.msra.mxu0 %v343
    %450 = vmatprep.subr.mxu0 0.0
    %451 = vmatpush1.msra.mxu0 0.0
    %452 = vmatprep.subr.mxu0 0.0
    %453 = vmatpush1.msra.mxu0 0.0
    %454 = vmatprep.subr.mxu0 0.0
    %455 = vmatpush1.msra.mxu0 0.0
    %456 = vmatprep.subr.mxu0 0.0
    %457 = vmatpush1.msra.mxu0 0.0
    %458 = vmatprep.subr.mxu0 0.0
    %459 = vmatpush1.msra.mxu0 0.0
    %460 = vmatprep.subr.mxu0 0.0
    %461 = vmatpush1.msra.mxu0 0.0
    %462 = vmatprep.subr.mxu0 0.0
    %463 = vmatpush1.msra.mxu0 0.0
    %464 = vmatprep.subr.mxu0 0.0
    %465 = vmatpush1.msra.mxu0 0.0
    %466 = vmatprep.subr.mxu0 0.0
    %467 = vmatpush1.msra.mxu0 0.0
    %468 = vmatprep.subr.mxu0 0.0
    %469 = vmatpush1.msra.mxu0 0.0
    %470 = vmatprep.subr.mxu0 0.0
    %471 = vmatpush1.msra.mxu0 0.0
    %472 = vmatprep.subr.mxu0 0.0
    %473 = vmatpush1.msra.mxu0 0.0
    %474 = vmatprep.subr.mxu0 0.0
    %475 = vmatpush1.msra.mxu0 0.0
    %476 = vmatprep.subr.mxu0 0.0
    %477 = vmatpush1.msra.mxu0 0.0
    %478 = vmatprep.subr.mxu0 0.0
    %479 = vmatpush1.msra.mxu0 0.0
    %480 = vmatprep.subr.mxu0 0.0
    %481 = vmatpush1.msra.mxu0 0.0
    %482 = vmatprep.mubr.f32.mxu0 0.0
    %483 = vmatmul.mubr.f32.gmra.mrb[0].mxu0 %v345
    %v484 = vpop.f32.mrb[0].mxu0
    %v485 = vadd.f32 0.0, %v484
    %v486 = vpop.f32.mrb[0].mxu0
    %v487 = vadd.f32 0.0, %v486
    %488 = vdwg.mxu0
    %v489 = vadd.f32 %v206, %v414
    %v490 = vadd.f32 %v208, %v416
    %v491 = vadd.f32 %v277, %v485
    %v492 = vadd.f32 %v279, %v487
    %v493 = vxor.u32 %v489, 2147483648
    %v494 = vxor.u32 %v490, 2147483648
    %v495 = vxor.u32 %v492, 2147483648
    %v496 = vmul.f32 %v493, 1.442695
    %v497 = vpow.pop %v496
    %v498 = vmul.f32 %v494, 1.442695
    %v499 = vpow.pop %v498
    %v500 = vmul.f32 %v495, 1.442695
    %v501 = vpow.pop %v500
    %v502 = vadd.f32 %v497, 1.0
    %v503 = vadd.f32 %v499, 1.0
    %v504 = vadd.f32 %v501, 1.0
    %v505 = vrcp.pop %v502
    %v506 = vmul.f32 1.0, %v505
    %v507 = vrcp.pop %v503
    %v508 = vmul.f32 1.0, %v507
    %v509 = vrcp.pop %v504
    %v510 = vmul.f32 1.0, %v509
    %v511 = vtanh.pop %v491
    %v512 = vmul.f32 %v508, %v346
    %v513 = vmul.f32 %v506, %v511
    %v514 = vadd.f32 %v512, %v513
    %v515 = vtanh.pop %v514
    %v516 = vmul.f32 %v510, %v515
    %517 = vmatprep.subr.mxu0 %v282
    %518 = vmatpush1.msra.mxu0 %v281
    %519 = vmatprep.subr.mxu0 %v286
    %520 = vmatpush1.msra.mxu0 %v285
    %521 = vmatprep.subr.mxu0 %v290
    %522 = vmatpush1.msra.mxu0 %v289
    %523 = vmatprep.subr.mxu0 %v294
    %524 = vmatpush1.msra.mxu0 %v293
    %525 = vmatprep.subr.mxu0 %v298
    %526 = vmatpush1.msra.mxu0 %v297
    %527 = vmatprep.subr.mxu0 %v302
    %528 = vmatpush1.msra.mxu0 %v301
    %529 = vmatprep.subr.mxu0 %v306
    %530 = vmatpush1.msra.mxu0 %v305
    %531 = vmatprep.subr.mxu0 %v310
    %532 = vmatpush1.msra.mxu0 %v309
    %533 = vmatprep.subr.mxu0 %v314
    %534 = vmatpush1.msra.mxu0 %v313
    %535 = vmatprep.subr.mxu0 %v318
    %536 = vmatpush1.msra.mxu0 %v317
    %537 = vmatprep.subr.mxu0 %v322
    %538 = vmatpush1.msra.mxu0 %v321
    %539 = vmatprep.subr.mxu0 %v326
    %540 = vmatpush1.msra.mxu0 %v325
    %541 = vmatprep.subr.mxu0 %v330
    %542 = vmatpush1.msra.mxu0 %v329
    %543 = vmatprep.subr.mxu0 %v334
    %544 = vmatpush1.msra.mxu0 %v333
    %545 = vmatprep.subr.mxu0 %v338
    %546 = vmatpush1.msra.mxu0 %v337
    %547 = vmatprep.subr.mxu0 %v342
    %548 = vmatpush1.msra.mxu0 %v341
    %549 = vmatprep.subr.mxu0 0.0
    %550 = vmatpush1.msra.mxu0 0.0
    %551 = vmatprep.subr.mxu0 0.0
    %552 = vmatpush1.msra.mxu0 0.0
    %553 = vmatprep.subr.mxu0 0.0
    %554 = vmatpush1.msra.mxu0 0.0
    %555 = vmatprep.subr.mxu0 0.0
    %556 = vmatpush1.msra.mxu0 0.0
    %557 = vmatprep.subr.mxu0 0.0
    %558 = vmatpush1.msra.mxu0 0.0
    %559 = vmatprep.subr.mxu0 0.0
    %560 = vmatpush1.msra.mxu0 0.0
    %561 = vmatprep.subr.mxu0 0.0
    %562 = vmatpush1.msra.mxu0 0.0
    %563 = vmatprep.subr.mxu0 0.0
    %564 = vmatpush1.msra.mxu0 0.0
    %565 = vmatprep.subr.mxu0 0.0
    %566 = vmatpush1.msra.mxu0 0.0
    %567 = vmatprep.subr.mxu0 0.0
    %568 = vmatpush1.msra.mxu0 0.0
    %569 = vmatprep.subr.mxu0 0.0
    %570 = vmatpush1.msra.mxu0 0.0
    %571 = vmatprep.subr.mxu0 0.0
    %572 = vmatpush1.msra.mxu0 0.0
    %573 = vmatprep.subr.mxu0 0.0
    %574 = vmatpush1.msra.mxu0 0.0
    %575 = vmatprep.subr.mxu0 0.0
    %576 = vmatpush1.msra.mxu0 0.0
    %577 = vmatprep.subr.mxu0 0.0
    %578 = vmatpush1.msra.mxu0 0.0
    %579 = vmatprep.subr.mxu0 0.0
    %580 = vmatpush1.msra.mxu0 0.0
    %581 = vmatprep.mubr.f32.mxu0 0.0
    %582 = vmatmul.mubr.f32.gmra.mrb[0].mxu0 %v516
    %v583 = vpop.f32.mrb[0].mxu0
    %v584 = vadd.f32 0.0, %v583
    %v585 = vpop.f32.mrb[0].mxu0
    %v586 = vadd.f32 0.0, %v585
    %587 = vdwg.mxu0
    %588 = vmatprep.subr.mxu0 %v284
    %589 = vmatpush1.msra.mxu0 %v283
    %590 = vmatprep.subr.mxu0 %v288
    %591 = vmatpush1.msra.mxu0 %v287
    %592 = vmatprep.subr.mxu0 %v292
    %593 = vmatpush1.msra.mxu0 %v291
    %594 = vmatprep.subr.mxu0 %v296
    %595 = vmatpush1.msra.mxu0 %v295
    %596 = vmatprep.subr.mxu0 %v300
    %597 = vmatpush1.msra.mxu0 %v299
    %598 = vmatprep.subr.mxu0 %v304
    %599 = vmatpush1.msra.mxu0 %v303
    %600 = vmatprep.subr.mxu0 %v308
    %601 = vmatpush1.msra.mxu0 %v307
    %602 = vmatprep.subr.mxu0 %v312
    %603 = vmatpush1.msra.mxu0 %v311
    %604 = vmatprep.subr.mxu0 %v316
    %605 = vmatpush1.msra.mxu0 %v315
    %606 = vmatprep.subr.mxu0 %v320
    %607 = vmatpush1.msra.mxu0 %v319
    %608 = vmatprep.subr.mxu0 %v324
    %609 = vmatpush1.msra.mxu0 %v323
    %610 = vmatprep.subr.mxu0 %v328
    %611 = vmatpush1.msra.mxu0 %v327
    %612 = vmatprep.subr.mxu0 %v332
    %613 = vmatpush1.msra.mxu0 %v331
    %614 = vmatprep.subr.mxu0 %v336
    %615 = vmatpush1.msra.mxu0 %v335
    %616 = vmatprep.subr.mxu0 %v340
    %617 = vmatpush1.msra.mxu0 %v339
    %618 = vmatprep.subr.mxu0 %v344
    %619 = vmatpush1.msra.mxu0 %v343
    %620 = vmatprep.subr.mxu0 0.0
    %621 = vmatpush1.msra.mxu0 0.0
    %622 = vmatprep.subr.mxu0 0.0
    %623 = vmatpush1.msra.mxu0 0.0
    %624 = vmatprep.subr.mxu0 0.0
    %625 = vmatpush1.msra.mxu0 0.0
    %626 = vmatprep.subr.mxu0 0.0
    %627 = vmatpush1.msra.mxu0 0.0
    %628 = vmatprep.subr.mxu0 0.0
    %629 = vmatpush1.msra.mxu0 0.0
    %630 = vmatprep.subr.mxu0 0.0
    %631 = vmatpush1.msra.mxu0 0.0
    %632 = vmatprep.subr.mxu0 0.0
    %633 = vmatpush1.msra.mxu0 0.0
    %634 = vmatprep.subr.mxu0 0.0
    %635 = vmatpush1.msra.mxu0 0.0
    %636 = vmatprep.subr.mxu0 0.0
    %637 = vmatpush1.msra.mxu0 0.0
    %638 = vmatprep.subr.mxu0 0.0
    %639 = vmatpush1.msra.mxu0 0.0
    %640 = vmatprep.subr.mxu0 0.0
    %641 = vmatpush1.msra.mxu0 0.0
    %642 = vmatprep.subr.mxu0 0.0
    %643 = vmatpush1.msra.mxu0 0.0
    %644 = vmatprep.subr.mxu0 0.0
    %645 = vmatpush1.msra.mxu0 0.0
    %646 = vmatprep.subr.mxu0 0.0
    %647 = vmatpush1.msra.mxu0 0.0
    %648 = vmatprep.subr.mxu0 0.0
    %649 = vmatpush1.msra.mxu0 0.0
    %650 = vmatprep.subr.mxu0 0.0
    %651 = vmatpush1.msra.mxu0 0.0
    %652 = vmatprep.mubr.f32.mxu0 0.0
    %653 = vmatmul.mubr.f32.gmra.mrb[0].mxu0 %v516
    %v654 = vpop.f32.mrb[0].mxu0
    %v655 = vadd.f32 0.0, %v654
    %v656 = vpop.f32.mrb[0].mxu0
    %v657 = vadd.f32 0.0, %v656
    %658 = vdwg.mxu0
    %v663 = vrot.slane %v584, 7
    %v664 = vrot.slane %v586, 7
    %v665 = vrot.slane %v655, 7
    %v666 = vrot.slane %v657, 7
    %v671 = vadd.f32 %v206, %v663
    %v672 = vadd.f32 %v208, %v664
    %v673 = vadd.f32 %v277, %v665
    %v674 = vadd.f32 %v279, %v666
    %v675 = vxor.u32 %v671, 2147483648
    %v676 = vxor.u32 %v672, 2147483648
    %v677 = vxor.u32 %v674, 2147483648
    %v678 = vmul.f32 %v675, 1.442695
    %v679 = vpow.pop %v678
    %v680 = vmul.f32 %v676, 1.442695
    %v681 = vpow.pop %v680
    %v682 = vmul.f32 %v677, 1.442695
    %v683 = vpow.pop %v682
    %v684 = vadd.f32 %v679, 1.0
    %v685 = vadd.f32 %v681, 1.0
    %v686 = vadd.f32 %v683, 1.0
    %v687 = vrcp.pop %v684
    %v688 = vmul.f32 1.0, %v687
    %v689 = vrcp.pop %v685
    %v690 = vmul.f32 1.0, %v689
    %v691 = vrcp.pop %v686
    %v692 = vmul.f32 1.0, %v691
    %v693 = vtanh.pop %v673
    %v695 = vrot.slane %v514, 7
    %v697 = vmul.f32 %v690, %v695
    %v698 = vmul.f32 %v688, %v693
    %v699 = vadd.f32 %v697, %v698
    %v700 = vtanh.pop %v699
    %v701 = vmul.f32 %v692, %v700
    %v703 = vrot.slane %v701, 1
    %705 = vmatprep.subr.mxu0 %v282
    %706 = vmatpush1.msra.mxu0 %v281
    %707 = vmatprep.subr.mxu0 %v286
    %708 = vmatpush1.msra.mxu0 %v285
    %709 = vmatprep.subr.mxu0 %v290
    %710 = vmatpush1.msra.mxu0 %v289
    %711 = vmatprep.subr.mxu0 %v294
    %712 = vmatpush1.msra.mxu0 %v293
    %713 = vmatprep.subr.mxu0 %v298
    %714 = vmatpush1.msra.mxu0 %v297
    %715 = vmatprep.subr.mxu0 %v302
    %716 = vmatpush1.msra.mxu0 %v301
    %717 = vmatprep.subr.mxu0 %v306
    %718 = vmatpush1.msra.mxu0 %v305
    %719 = vmatprep.subr.mxu0 %v310
    %720 = vmatpush1.msra.mxu0 %v309
    %721 = vmatprep.subr.mxu0 %v314
    %722 = vmatpush1.msra.mxu0 %v313
    %723 = vmatprep.subr.mxu0 %v318
    %724 = vmatpush1.msra.mxu0 %v317
    %725 = vmatprep.subr.mxu0 %v322
    %726 = vmatpush1.msra.mxu0 %v321
    %727 = vmatprep.subr.mxu0 %v326
    %728 = vmatpush1.msra.mxu0 %v325
    %729 = vmatprep.subr.mxu0 %v330
    %730 = vmatpush1.msra.mxu0 %v329
    %731 = vmatprep.subr.mxu0 %v334
    %732 = vmatpush1.msra.mxu0 %v333
    %733 = vmatprep.subr.mxu0 %v338
    %734 = vmatpush1.msra.mxu0 %v337
    %735 = vmatprep.subr.mxu0 %v342
    %736 = vmatpush1.msra.mxu0 %v341
    %737 = vmatprep.subr.mxu0 0.0
    %738 = vmatpush1.msra.mxu0 0.0
    %739 = vmatprep.subr.mxu0 0.0
    %740 = vmatpush1.msra.mxu0 0.0
    %741 = vmatprep.subr.mxu0 0.0
    %742 = vmatpush1.msra.mxu0 0.0
    %743 = vmatprep.subr.mxu0 0.0
    %744 = vmatpush1.msra.mxu0 0.0
    %745 = vmatprep.subr.mxu0 0.0
    %746 = vmatpush1.msra.mxu0 0.0
    %747 = vmatprep.subr.mxu0 0.0
    %748 = vmatpush1.msra.mxu0 0.0
    %749 = vmatprep.subr.mxu0 0.0
    %750 = vmatpush1.msra.mxu0 0.0
    %751 = vmatprep.subr.mxu0 0.0
    %752 = vmatpush1.msra.mxu0 0.0
    %753 = vmatprep.subr.mxu0 0.0
    %754 = vmatpush1.msra.mxu0 0.0
    %755 = vmatprep.subr.mxu0 0.0
    %756 = vmatpush1.msra.mxu0 0.0
    %757 = vmatprep.subr.mxu0 0.0
    %758 = vmatpush1.msra.mxu0 0.0
    %759 = vmatprep.subr.mxu0 0.0
    %760 = vmatpush1.msra.mxu0 0.0
    %761 = vmatprep.subr.mxu0 0.0
    %762 = vmatpush1.msra.mxu0 0.0
    %763 = vmatprep.subr.mxu0 0.0
    %764 = vmatpush1.msra.mxu0 0.0
    %765 = vmatprep.subr.mxu0 0.0
    %766 = vmatpush1.msra.mxu0 0.0
    %767 = vmatprep.subr.mxu0 0.0
    %768 = vmatpush1.msra.mxu0 0.0
    %769 = vmatprep.mubr.f32.mxu0 0.0
    %770 = vmatmul.mubr.f32.gmra.mrb[0].mxu0 %v703
    %v771 = vpop.f32.mrb[0].mxu0
    %v772 = vadd.f32 0.0, %v771
    %v773 = vpop.f32.mrb[0].mxu0
    %v774 = vadd.f32 0.0, %v773
    %775 = vdwg.mxu0
    %776 = vmatprep.subr.mxu0 %v284
    %777 = vmatpush1.msra.mxu0 %v283
    %778 = vmatprep.subr.mxu0 %v288
    %779 = vmatpush1.msra.mxu0 %v287
    %780 = vmatprep.subr.mxu0 %v292
    %781 = vmatpush1.msra.mxu0 %v291
    %782 = vmatprep.subr.mxu0 %v296
    %783 = vmatpush1.msra.mxu0 %v295
    %784 = vmatprep.subr.mxu0 %v300
    %785 = vmatpush1.msra.mxu0 %v299
    %786 = vmatprep.subr.mxu0 %v304
    %787 = vmatpush1.msra.mxu0 %v303
    %788 = vmatprep.subr.mxu0 %v308
    %789 = vmatpush1.msra.mxu0 %v307
    %790 = vmatprep.subr.mxu0 %v312
    %791 = vmatpush1.msra.mxu0 %v311
    %792 = vmatprep.subr.mxu0 %v316
    %793 = vmatpush1.msra.mxu0 %v315
    %794 = vmatprep.subr.mxu0 %v320
    %795 = vmatpush1.msra.mxu0 %v319
    %796 = vmatprep.subr.mxu0 %v324
    %797 = vmatpush1.msra.mxu0 %v323
    %798 = vmatprep.subr.mxu0 %v328
    %799 = vmatpush1.msra.mxu0 %v327
    %800 = vmatprep.subr.mxu0 %v332
    %801 = vmatpush1.msra.mxu0 %v331
    %802 = vmatprep.subr.mxu0 %v336
    %803 = vmatpush1.msra.mxu0 %v335
    %804 = vmatprep.subr.mxu0 %v340
    %805 = vmatpush1.msra.mxu0 %v339
    %806 = vmatprep.subr.mxu0 %v344
    %807 = vmatpush1.msra.mxu0 %v343
    %808 = vmatprep.subr.mxu0 0.0
    %809 = vmatpush1.msra.mxu0 0.0
    %810 = vmatprep.subr.mxu0 0.0
    %811 = vmatpush1.msra.mxu0 0.0
    %812 = vmatprep.subr.mxu0 0.0
    %813 = vmatpush1.msra.mxu0 0.0
    %814 = vmatprep.subr.mxu0 0.0
    %815 = vmatpush1.msra.mxu0 0.0
    %816 = vmatprep.subr.mxu0 0.0
    %817 = vmatpush1.msra.mxu0 0.0
    %818 = vmatprep.subr.mxu0 0.0
    %819 = vmatpush1.msra.mxu0 0.0
    %820 = vmatprep.subr.mxu0 0.0
    %821 = vmatpush1.msra.mxu0 0.0
    %822 = vmatprep.subr.mxu0 0.0
    %823 = vmatpush1.msra.mxu0 0.0
    %824 = vmatprep.subr.mxu0 0.0
    %825 = vmatpush1.msra.mxu0 0.0
    %826 = vmatprep.subr.mxu0 0.0
    %827 = vmatpush1.msra.mxu0 0.0
    %828 = vmatprep.subr.mxu0 0.0
    %829 = vmatpush1.msra.mxu0 0.0
    %830 = vmatprep.subr.mxu0 0.0
    %831 = vmatpush1.msra.mxu0 0.0
    %832 = vmatprep.subr.mxu0 0.0
    %833 = vmatpush1.msra.mxu0 0.0
    %834 = vmatprep.subr.mxu0 0.0
    %835 = vmatpush1.msra.mxu0 0.0
    %836 = vmatprep.subr.mxu0 0.0
    %837 = vmatpush1.msra.mxu0 0.0
    %838 = vmatprep.subr.mxu0 0.0
    %839 = vmatpush1.msra.mxu0 0.0
    %840 = vmatprep.mubr.f32.mxu0 0.0
    %841 = vmatmul.mubr.f32.gmra.mrb[0].mxu0 %v703
    %v842 = vpop.f32.mrb[0].mxu0
    %v843 = vadd.f32 0.0, %v842
    %v844 = vpop.f32.mrb[0].mxu0
    %v845 = vadd.f32 0.0, %v844
    %846 = vdwg.mxu0
    %v851 = vrot.slane %v772, 6
    %v852 = vrot.slane %v774, 6
    %v853 = vrot.slane %v843, 6
    %v854 = vrot.slane %v845, 6
    %v859 = vadd.f32 %v206, %v851
    %v860 = vadd.f32 %v208, %v852
    %v861 = vadd.f32 %v277, %v853
    %v862 = vadd.f32 %v279, %v854
    %v863 = vxor.u32 %v859, 2147483648
    %v864 = vxor.u32 %v860, 2147483648
    %v865 = vxor.u32 %v862, 2147483648
    %v866 = vmul.f32 %v863, 1.442695
    %v867 = vpow.pop %v866
    %v868 = vmul.f32 %v864, 1.442695
    %v869 = vpow.pop %v868
    %v870 = vmul.f32 %v865, 1.442695
    %v871 = vpow.pop %v870
    %v872 = vadd.f32 %v867, 1.0
    %v873 = vadd.f32 %v869, 1.0
    %v874 = vadd.f32 %v871, 1.0
    %v875 = vrcp.pop %v872
    %v876 = vmul.f32 1.0, %v875
    %v877 = vrcp.pop %v873
    %v878 = vmul.f32 1.0, %v877
    %v879 = vrcp.pop %v874
    %v880 = vmul.f32 1.0, %v879
    %v881 = vtanh.pop %v861
    %v883 = vrot.slane %v699, 7
    %v885 = vmul.f32 %v878, %v883
    %v886 = vmul.f32 %v876, %v881
    %v887 = vadd.f32 %v885, %v886
    %v888 = vtanh.pop %v887
    %v889 = vmul.f32 %v880, %v888
    %v891 = vrot.slane %v889, 2
    %893 = vmatprep.subr.mxu0 %v282
    %894 = vmatpush1.msra.mxu0 %v281
    %895 = vmatprep.subr.mxu0 %v286
    %896 = vmatpush1.msra.mxu0 %v285
    %897 = vmatprep.subr.mxu0 %v290
    %898 = vmatpush1.msra.mxu0 %v289
    %899 = vmatprep.subr.mxu0 %v294
    %900 = vmatpush1.msra.mxu0 %v293
    %901 = vmatprep.subr.mxu0 %v298
    %902 = vmatpush1.msra.mxu0 %v297
    %903 = vmatprep.subr.mxu0 %v302
    %904 = vmatpush1.msra.mxu0 %v301
    %905 = vmatprep.subr.mxu0 %v306
    %906 = vmatpush1.msra.mxu0 %v305
    %907 = vmatprep.subr.mxu0 %v310
    %908 = vmatpush1.msra.mxu0 %v309
    %909 = vmatprep.subr.mxu0 %v314
    %910 = vmatpush1.msra.mxu0 %v313
    %911 = vmatprep.subr.mxu0 %v318
    %912 = vmatpush1.msra.mxu0 %v317
    %913 = vmatprep.subr.mxu0 %v322
    %914 = vmatpush1.msra.mxu0 %v321
    %915 = vmatprep.subr.mxu0 %v326
    %916 = vmatpush1.msra.mxu0 %v325
    %917 = vmatprep.subr.mxu0 %v330
    %918 = vmatpush1.msra.mxu0 %v329
    %919 = vmatprep.subr.mxu0 %v334
    %920 = vmatpush1.msra.mxu0 %v333
    %921 = vmatprep.subr.mxu0 %v338
    %922 = vmatpush1.msra.mxu0 %v337
    %923 = vmatprep.subr.mxu0 %v342
    %924 = vmatpush1.msra.mxu0 %v341
    %925 = vmatprep.subr.mxu0 0.0
    %926 = vmatpush1.msra.mxu0 0.0
    %927 = vmatprep.subr.mxu0 0.0
    %928 = vmatpush1.msra.mxu0 0.0
    %929 = vmatprep.subr.mxu0 0.0
    %930 = vmatpush1.msra.mxu0 0.0
    %931 = vmatprep.subr.mxu0 0.0
    %932 = vmatpush1.msra.mxu0 0.0
    %933 = vmatprep.subr.mxu0 0.0
    %934 = vmatpush1.msra.mxu0 0.0
    %935 = vmatprep.subr.mxu0 0.0
    %936 = vmatpush1.msra.mxu0 0.0
    %937 = vmatprep.subr.mxu0 0.0
    %938 = vmatpush1.msra.mxu0 0.0
    %939 = vmatprep.subr.mxu0 0.0
    %940 = vmatpush1.msra.mxu0 0.0
    %941 = vmatprep.subr.mxu0 0.0
    %942 = vmatpush1.msra.mxu0 0.0
    %943 = vmatprep.subr.mxu0 0.0
    %944 = vmatpush1.msra.mxu0 0.0
    %945 = vmatprep.subr.mxu0 0.0
    %946 = vmatpush1.msra.mxu0 0.0
    %947 = vmatprep.subr.mxu0 0.0
    %948 = vmatpush1.msra.mxu0 0.0
    %949 = vmatprep.subr.mxu0 0.0
    %950 = vmatpush1.msra.mxu0 0.0
    %951 = vmatprep.subr.mxu0 0.0
    %952 = vmatpush1.msra.mxu0 0.0
    %953 = vmatprep.subr.mxu0 0.0
    %954 = vmatpush1.msra.mxu0 0.0
    %955 = vmatprep.subr.mxu0 0.0
    %956 = vmatpush1.msra.mxu0 0.0
    %957 = vmatprep.mubr.f32.mxu0 0.0
    %958 = vmatmul.mubr.f32.gmra.mrb[0].mxu0 %v891
    %v959 = vpop.f32.mrb[0].mxu0
    %v960 = vadd.f32 0.0, %v959
    %v961 = vpop.f32.mrb[0].mxu0
    %v962 = vadd.f32 0.0, %v961
    %963 = vdwg.mxu0
    %964 = vmatprep.subr.mxu0 %v284
    %965 = vmatpush1.msra.mxu0 %v283
    %966 = vmatprep.subr.mxu0 %v288
    %967 = vmatpush1.msra.mxu0 %v287
    %968 = vmatprep.subr.mxu0 %v292
    %969 = vmatpush1.msra.mxu0 %v291
    %970 = vmatprep.subr.mxu0 %v296
    %971 = vmatpush1.msra.mxu0 %v295
    %972 = vmatprep.subr.mxu0 %v300
    %973 = vmatpush1.msra.mxu0 %v299
    %974 = vmatprep.subr.mxu0 %v304
    %975 = vmatpush1.msra.mxu0 %v303
    %976 = vmatprep.subr.mxu0 %v308
    %977 = vmatpush1.msra.mxu0 %v307
    %978 = vmatprep.subr.mxu0 %v312
    %979 = vmatpush1.msra.mxu0 %v311
    %980 = vmatprep.subr.mxu0 %v316
    %981 = vmatpush1.msra.mxu0 %v315
    %982 = vmatprep.subr.mxu0 %v320
    %983 = vmatpush1.msra.mxu0 %v319
    %984 = vmatprep.subr.mxu0 %v324
    %985 = vmatpush1.msra.mxu0 %v323
    %986 = vmatprep.subr.mxu0 %v328
    %987 = vmatpush1.msra.mxu0 %v327
    %988 = vmatprep.subr.mxu0 %v332
    %989 = vmatpush1.msra.mxu0 %v331
    %990 = vmatprep.subr.mxu0 %v336
    %991 = vmatpush1.msra.mxu0 %v335
    %992 = vmatprep.subr.mxu0 %v340
    %993 = vmatpush1.msra.mxu0 %v339
    %994 = vmatprep.subr.mxu0 %v344
    %995 = vmatpush1.msra.mxu0 %v343
    %996 = vmatprep.subr.mxu0 0.0
    %997 = vmatpush1.msra.mxu0 0.0
    %998 = vmatprep.subr.mxu0 0.0
    %999 = vmatpush1.msra.mxu0 0.0
    %1000 = vmatprep.subr.mxu0 0.0
    %1001 = vmatpush1.msra.mxu0 0.0
    %1002 = vmatprep.subr.mxu0 0.0
    %1003 = vmatpush1.msra.mxu0 0.0
    %1004 = vmatprep.subr.mxu0 0.0
    %1005 = vmatpush1.msra.mxu0 0.0
    %1006 = vmatprep.subr.mxu0 0.0
    %1007 = vmatpush1.msra.mxu0 0.0
    %1008 = vmatprep.subr.mxu0 0.0
    %1009 = vmatpush1.msra.mxu0 0.0
    %1010 = vmatprep.subr.mxu0 0.0
    %1011 = vmatpush1.msra.mxu0 0.0
    %1012 = vmatprep.subr.mxu0 0.0
    %1013 = vmatpush1.msra.mxu0 0.0
    %1014 = vmatprep.subr.mxu0 0.0
    %1015 = vmatpush1.msra.mxu0 0.0
    %1016 = vmatprep.subr.mxu0 0.0
    %1017 = vmatpush1.msra.mxu0 0.0
    %1018 = vmatprep.subr.mxu0 0.0
    %1019 = vmatpush1.msra.mxu0 0.0
    %1020 = vmatprep.subr.mxu0 0.0
    %1021 = vmatpush1.msra.mxu0 0.0
    %1022 = vmatprep.subr.mxu0 0.0
    %1023 = vmatpush1.msra.mxu0 0.0
    %1024 = vmatprep.subr.mxu0 0.0
    %1025 = vmatpush1.msra.mxu0 0.0
    %1026 = vmatprep.subr.mxu0 0.0
    %1027 = vmatpush1.msra.mxu0 0.0
    %1028 = vmatprep.mubr.f32.mxu0 0.0
    %1029 = vmatmul.mubr.f32.gmra.mrb[0].mxu0 %v891
    %v1030 = vpop.f32.mrb[0].mxu0
    %v1031 = vadd.f32 0.0, %v1030
    %v1032 = vpop.f32.mrb[0].mxu0
    %v1033 = vadd.f32 0.0, %v1032
    %1034 = vdwg.mxu0
    %v1039 = vrot.slane %v960, 5
    %v1040 = vrot.slane %v962, 5
    %v1041 = vrot.slane %v1031, 5
    %v1042 = vrot.slane %v1033, 5
    %v1047 = vadd.f32 %v206, %v1039
    %v1048 = vadd.f32 %v208, %v1040
    %v1049 = vadd.f32 %v277, %v1041
    %v1050 = vadd.f32 %v279, %v1042
    %v1051 = vxor.u32 %v1047, 2147483648
    %v1052 = vxor.u32 %v1048, 2147483648
    %v1053 = vxor.u32 %v1050, 2147483648
    %v1054 = vmul.f32 %v1051, 1.442695
    %v1055 = vpow.pop %v1054
    %v1056 = vmul.f32 %v1052, 1.442695
    %v1057 = vpow.pop %v1056
    %v1058 = vmul.f32 %v1053, 1.442695
    %v1059 = vpow.pop %v1058
    %v1060 = vadd.f32 %v1055, 1.0
    %v1061 = vadd.f32 %v1057, 1.0
    %v1062 = vadd.f32 %v1059, 1.0
    %v1063 = vrcp.pop %v1060
    %v1064 = vmul.f32 1.0, %v1063
    %v1065 = vrcp.pop %v1061
    %v1066 = vmul.f32 1.0, %v1065
    %v1067 = vrcp.pop %v1062
    %v1068 = vmul.f32 1.0, %v1067
    %v1069 = vtanh.pop %v1049
    %v1071 = vrot.slane %v887, 7
    %v1073 = vmul.f32 %v1066, %v1071
    %v1074 = vmul.f32 %v1064, %v1069
    %v1075 = vadd.f32 %v1073, %v1074
    %v1076 = vtanh.pop %v1075
    %v1077 = vmul.f32 %v1068, %v1076
    %v1079 = vrot.slane %v1077, 3
    %1081 = vmatprep.subr.mxu0 %v282
    %1082 = vmatpush1.msra.mxu0 %v281
    %1083 = vmatprep.subr.mxu0 %v286
    %1084 = vmatpush1.msra.mxu0 %v285
    %1085 = vmatprep.subr.mxu0 %v290
    %1086 = vmatpush1.msra.mxu0 %v289
    %1087 = vmatprep.subr.mxu0 %v294
    %1088 = vmatpush1.msra.mxu0 %v293
    %1089 = vmatprep.subr.mxu0 %v298
    %1090 = vmatpush1.msra.mxu0 %v297
    %1091 = vmatprep.subr.mxu0 %v302
    %1092 = vmatpush1.msra.mxu0 %v301
    %1093 = vmatprep.subr.mxu0 %v306
    %1094 = vmatpush1.msra.mxu0 %v305
    %1095 = vmatprep.subr.mxu0 %v310
    %1096 = vmatpush1.msra.mxu0 %v309
    %1097 = vmatprep.subr.mxu0 %v314
    %1098 = vmatpush1.msra.mxu0 %v313
    %1099 = vmatprep.subr.mxu0 %v318
    %1100 = vmatpush1.msra.mxu0 %v317
    %1101 = vmatprep.subr.mxu0 %v322
    %1102 = vmatpush1.msra.mxu0 %v321
    %1103 = vmatprep.subr.mxu0 %v326
    %1104 = vmatpush1.msra.mxu0 %v325
    %1105 = vmatprep.subr.mxu0 %v330
    %1106 = vmatpush1.msra.mxu0 %v329
    %1107 = vmatprep.subr.mxu0 %v334
    %1108 = vmatpush1.msra.mxu0 %v333
    %1109 = vmatprep.subr.mxu0 %v338
    %1110 = vmatpush1.msra.mxu0 %v337
    %1111 = vmatprep.subr.mxu0 %v342
    %1112 = vmatpush1.msra.mxu0 %v341
    %1113 = vmatprep.subr.mxu0 0.0
    %1114 = vmatpush1.msra.mxu0 0.0
    %1115 = vmatprep.subr.mxu0 0.0
    %1116 = vmatpush1.msra.mxu0 0.0
    %1117 = vmatprep.subr.mxu0 0.0
    %1118 = vmatpush1.msra.mxu0 0.0
    %1119 = vmatprep.subr.mxu0 0.0
    %1120 = vmatpush1.msra.mxu0 0.0
    %1121 = vmatprep.subr.mxu0 0.0
    %1122 = vmatpush1.msra.mxu0 0.0
    %1123 = vmatprep.subr.mxu0 0.0
    %1124 = vmatpush1.msra.mxu0 0.0
    %1125 = vmatprep.subr.mxu0 0.0
    %1126 = vmatpush1.msra.mxu0 0.0
    %1127 = vmatprep.subr.mxu0 0.0
    %1128 = vmatpush1.msra.mxu0 0.0
    %1129 = vmatprep.subr.mxu0 0.0
    %1130 = vmatpush1.msra.mxu0 0.0
    %1131 = vmatprep.subr.mxu0 0.0
    %1132 = vmatpush1.msra.mxu0 0.0
    %1133 = vmatprep.subr.mxu0 0.0
    %1134 = vmatpush1.msra.mxu0 0.0
    %1135 = vmatprep.subr.mxu0 0.0
    %1136 = vmatpush1.msra.mxu0 0.0
    %1137 = vmatprep.subr.mxu0 0.0
    %1138 = vmatpush1.msra.mxu0 0.0
    %1139 = vmatprep.subr.mxu0 0.0
    %1140 = vmatpush1.msra.mxu0 0.0
    %1141 = vmatprep.subr.mxu0 0.0
    %1142 = vmatpush1.msra.mxu0 0.0
    %1143 = vmatprep.subr.mxu0 0.0
    %1144 = vmatpush1.msra.mxu0 0.0
    %1145 = vmatprep.mubr.f32.mxu0 0.0
    %1146 = vmatmul.mubr.f32.gmra.mrb[0].mxu0 %v1079
    %v1147 = vpop.f32.mrb[0].mxu0
    %v1148 = vadd.f32 0.0, %v1147
    %v1149 = vpop.f32.mrb[0].mxu0
    %v1150 = vadd.f32 0.0, %v1149
    %1151 = vdwg.mxu0
    %1152 = vmatprep.subr.mxu0 %v284
    %1153 = vmatpush1.msra.mxu0 %v283
    %1154 = vmatprep.subr.mxu0 %v288
    %1155 = vmatpush1.msra.mxu0 %v287
    %1156 = vmatprep.subr.mxu0 %v292
    %1157 = vmatpush1.msra.mxu0 %v291
    %1158 = vmatprep.subr.mxu0 %v296
    %1159 = vmatpush1.msra.mxu0 %v295
    %1160 = vmatprep.subr.mxu0 %v300
    %1161 = vmatpush1.msra.mxu0 %v299
    %1162 = vmatprep.subr.mxu0 %v304
    %1163 = vmatpush1.msra.mxu0 %v303
    %1164 = vmatprep.subr.mxu0 %v308
    %1165 = vmatpush1.msra.mxu0 %v307
    %1166 = vmatprep.subr.mxu0 %v312
    %1167 = vmatpush1.msra.mxu0 %v311
    %1168 = vmatprep.subr.mxu0 %v316
    %1169 = vmatpush1.msra.mxu0 %v315
    %1170 = vmatprep.subr.mxu0 %v320
    %1171 = vmatpush1.msra.mxu0 %v319
    %1172 = vmatprep.subr.mxu0 %v324
    %1173 = vmatpush1.msra.mxu0 %v323
    %1174 = vmatprep.subr.mxu0 %v328
    %1175 = vmatpush1.msra.mxu0 %v327
    %1176 = vmatprep.subr.mxu0 %v332
    %1177 = vmatpush1.msra.mxu0 %v331
    %1178 = vmatprep.subr.mxu0 %v336
    %1179 = vmatpush1.msra.mxu0 %v335
    %1180 = vmatprep.subr.mxu0 %v340
    %1181 = vmatpush1.msra.mxu0 %v339
    %1182 = vmatprep.subr.mxu0 %v344
    %1183 = vmatpush1.msra.mxu0 %v343
    %1184 = vmatprep.subr.mxu0 0.0
    %1185 = vmatpush1.msra.mxu0 0.0
    %1186 = vmatprep.subr.mxu0 0.0
    %1187 = vmatpush1.msra.mxu0 0.0
    %1188 = vmatprep.subr.mxu0 0.0
    %1189 = vmatpush1.msra.mxu0 0.0
    %1190 = vmatprep.subr.mxu0 0.0
    %1191 = vmatpush1.msra.mxu0 0.0
    %1192 = vmatprep.subr.mxu0 0.0
    %1193 = vmatpush1.msra.mxu0 0.0
    %1194 = vmatprep.subr.mxu0 0.0
    %1195 = vmatpush1.msra.mxu0 0.0
    %1196 = vmatprep.subr.mxu0 0.0
    %1197 = vmatpush1.msra.mxu0 0.0
    %1198 = vmatprep.subr.mxu0 0.0
    %1199 = vmatpush1.msra.mxu0 0.0
    %1200 = vmatprep.subr.mxu0 0.0
    %1201 = vmatpush1.msra.mxu0 0.0
    %1202 = vmatprep.subr.mxu0 0.0
    %1203 = vmatpush1.msra.mxu0 0.0
    %1204 = vmatprep.subr.mxu0 0.0
    %1205 = vmatpush1.msra.mxu0 0.0
    %1206 = vmatprep.subr.mxu0 0.0
    %1207 = vmatpush1.msra.mxu0 0.0
    %1208 = vmatprep.subr.mxu0 0.0
    %1209 = vmatpush1.msra.mxu0 0.0
    %1210 = vmatprep.subr.mxu0 0.0
    %1211 = vmatpush1.msra.mxu0 0.0
    %1212 = vmatprep.subr.mxu0 0.0
    %1213 = vmatpush1.msra.mxu0 0.0
    %1214 = vmatprep.subr.mxu0 0.0
    %1215 = vmatpush1.msra.mxu0 0.0
    %1216 = vmatprep.mubr.f32.mxu0 0.0
    %1217 = vmatmul.mubr.f32.gmra.mrb[0].mxu0 %v1079
    %v1218 = vpop.f32.mrb[0].mxu0
    %v1219 = vadd.f32 0.0, %v1218
    %v1220 = vpop.f32.mrb[0].mxu0
    %v1221 = vadd.f32 0.0, %v1220
    %1222 = vdwg.mxu0
    %v1227 = vrot.slane %v1148, 4
    %v1228 = vrot.slane %v1150, 4
    %v1229 = vrot.slane %v1219, 4
    %v1230 = vrot.slane %v1221, 4
    %v1235 = vadd.f32 %v206, %v1227
    %v1236 = vadd.f32 %v208, %v1228
    %v1237 = vadd.f32 %v277, %v1229
    %v1238 = vadd.f32 %v279, %v1230
    %v1239 = vxor.u32 %v1235, 2147483648
    %v1240 = vxor.u32 %v1236, 2147483648
    %v1241 = vxor.u32 %v1238, 2147483648
    %v1242 = vmul.f32 %v1239, 1.442695
    %v1243 = vpow.pop %v1242
    %v1244 = vmul.f32 %v1240, 1.442695
    %v1245 = vpow.pop %v1244
    %v1246 = vmul.f32 %v1241, 1.442695
    %v1247 = vpow.pop %v1246
    %v1248 = vadd.f32 %v1243, 1.0
    %v1249 = vadd.f32 %v1245, 1.0
    %v1250 = vadd.f32 %v1247, 1.0
    %v1251 = vrcp.pop %v1248
    %v1252 = vmul.f32 1.0, %v1251
    %v1253 = vrcp.pop %v1249
    %v1254 = vmul.f32 1.0, %v1253
    %v1255 = vrcp.pop %v1250
    %v1256 = vmul.f32 1.0, %v1255
    %v1257 = vtanh.pop %v1237
    %v1259 = vrot.slane %v1075, 7
    %v1261 = vmul.f32 %v1254, %v1259
    %v1262 = vmul.f32 %v1252, %v1257
    %v1263 = vadd.f32 %v1261, %v1262
    %v1264 = vtanh.pop %v1263
    %v1265 = vmul.f32 %v1256, %v1264
    %v1267 = vrot.slane %v1265, 4
    %1269 = vmatprep.subr.mxu0 %v282
    %1270 = vmatpush1.msra.mxu0 %v281
    %1271 = vmatprep.subr.mxu0 %v286
    %1272 = vmatpush1.msra.mxu0 %v285
    %1273 = vmatprep.subr.mxu0 %v290
    %1274 = vmatpush1.msra.mxu0 %v289
    %1275 = vmatprep.subr.mxu0 %v294
    %1276 = vmatpush1.msra.mxu0 %v293
    %1277 = vmatprep.subr.mxu0 %v298
    %1278 = vmatpush1.msra.mxu0 %v297
    %1279 = vmatprep.subr.mxu0 %v302
    %1280 = vmatpush1.msra.mxu0 %v301
    %1281 = vmatprep.subr.mxu0 %v306
    %1282 = vmatpush1.msra.mxu0 %v305
    %1283 = vmatprep.subr.mxu0 %v310
    %1284 = vmatpush1.msra.mxu0 %v309
    %1285 = vmatprep.subr.mxu0 %v314
    %1286 = vmatpush1.msra.mxu0 %v313
    %1287 = vmatprep.subr.mxu0 %v318
    %1288 = vmatpush1.msra.mxu0 %v317
    %1289 = vmatprep.subr.mxu0 %v322
    %1290 = vmatpush1.msra.mxu0 %v321
    %1291 = vmatprep.subr.mxu0 %v326
    %1292 = vmatpush1.msra.mxu0 %v325
    %1293 = vmatprep.subr.mxu0 %v330
    %1294 = vmatpush1.msra.mxu0 %v329
    %1295 = vmatprep.subr.mxu0 %v334
    %1296 = vmatpush1.msra.mxu0 %v333
    %1297 = vmatprep.subr.mxu0 %v338
    %1298 = vmatpush1.msra.mxu0 %v337
    %1299 = vmatprep.subr.mxu0 %v342
    %1300 = vmatpush1.msra.mxu0 %v341
    %1301 = vmatprep.subr.mxu0 0.0
    %1302 = vmatpush1.msra.mxu0 0.0
    %1303 = vmatprep.subr.mxu0 0.0
    %1304 = vmatpush1.msra.mxu0 0.0
    %1305 = vmatprep.subr.mxu0 0.0
    %1306 = vmatpush1.msra.mxu0 0.0
    %1307 = vmatprep.subr.mxu0 0.0
    %1308 = vmatpush1.msra.mxu0 0.0
    %1309 = vmatprep.subr.mxu0 0.0
    %1310 = vmatpush1.msra.mxu0 0.0
    %1311 = vmatprep.subr.mxu0 0.0
    %1312 = vmatpush1.msra.mxu0 0.0
    %1313 = vmatprep.subr.mxu0 0.0
    %1314 = vmatpush1.msra.mxu0 0.0
    %1315 = vmatprep.subr.mxu0 0.0
    %1316 = vmatpush1.msra.mxu0 0.0
    %1317 = vmatprep.subr.mxu0 0.0
    %1318 = vmatpush1.msra.mxu0 0.0
    %1319 = vmatprep.subr.mxu0 0.0
    %1320 = vmatpush1.msra.mxu0 0.0
    %1321 = vmatprep.subr.mxu0 0.0
    %1322 = vmatpush1.msra.mxu0 0.0
    %1323 = vmatprep.subr.mxu0 0.0
    %1324 = vmatpush1.msra.mxu0 0.0
    %1325 = vmatprep.subr.mxu0 0.0
    %1326 = vmatpush1.msra.mxu0 0.0
    %1327 = vmatprep.subr.mxu0 0.0
    %1328 = vmatpush1.msra.mxu0 0.0
    %1329 = vmatprep.subr.mxu0 0.0
    %1330 = vmatpush1.msra.mxu0 0.0
    %1331 = vmatprep.subr.mxu0 0.0
    %1332 = vmatpush1.msra.mxu0 0.0
    %1333 = vmatprep.mubr.f32.mxu0 0.0
    %1334 = vmatmul.mubr.f32.gmra.mrb[0].mxu0 %v1267
    %v1335 = vpop.f32.mrb[0].mxu0
    %v1336 = vadd.f32 0.0, %v1335
    %v1337 = vpop.f32.mrb[0].mxu0
    %v1338 = vadd.f32 0.0, %v1337
    %1339 = vdwg.mxu0
    %1340 = vmatprep.subr.mxu0 %v284
    %1341 = vmatpush1.msra.mxu0 %v283
    %1342 = vmatprep.subr.mxu0 %v288
    %1343 = vmatpush1.msra.mxu0 %v287
    %1344 = vmatprep.subr.mxu0 %v292
    %1345 = vmatpush1.msra.mxu0 %v291
    %1346 = vmatprep.subr.mxu0 %v296
    %1347 = vmatpush1.msra.mxu0 %v295
    %1348 = vmatprep.subr.mxu0 %v300
    %1349 = vmatpush1.msra.mxu0 %v299
    %1350 = vmatprep.subr.mxu0 %v304
    %1351 = vmatpush1.msra.mxu0 %v303
    %1352 = vmatprep.subr.mxu0 %v308
    %1353 = vmatpush1.msra.mxu0 %v307
    %1354 = vmatprep.subr.mxu0 %v312
    %1355 = vmatpush1.msra.mxu0 %v311
    %1356 = vmatprep.subr.mxu0 %v316
    %1357 = vmatpush1.msra.mxu0 %v315
    %1358 = vmatprep.subr.mxu0 %v320
    %1359 = vmatpush1.msra.mxu0 %v319
    %1360 = vmatprep.subr.mxu0 %v324
    %1361 = vmatpush1.msra.mxu0 %v323
    %1362 = vmatprep.subr.mxu0 %v328
    %1363 = vmatpush1.msra.mxu0 %v327
    %1364 = vmatprep.subr.mxu0 %v332
    %1365 = vmatpush1.msra.mxu0 %v331
    %1366 = vmatprep.subr.mxu0 %v336
    %1367 = vmatpush1.msra.mxu0 %v335
    %1368 = vmatprep.subr.mxu0 %v340
    %1369 = vmatpush1.msra.mxu0 %v339
    %1370 = vmatprep.subr.mxu0 %v344
    %1371 = vmatpush1.msra.mxu0 %v343
    %1372 = vmatprep.subr.mxu0 0.0
    %1373 = vmatpush1.msra.mxu0 0.0
    %1374 = vmatprep.subr.mxu0 0.0
    %1375 = vmatpush1.msra.mxu0 0.0
    %1376 = vmatprep.subr.mxu0 0.0
    %1377 = vmatpush1.msra.mxu0 0.0
    %1378 = vmatprep.subr.mxu0 0.0
    %1379 = vmatpush1.msra.mxu0 0.0
    %1380 = vmatprep.subr.mxu0 0.0
    %1381 = vmatpush1.msra.mxu0 0.0
    %1382 = vmatprep.subr.mxu0 0.0
    %1383 = vmatpush1.msra.mxu0 0.0
    %1384 = vmatprep.subr.mxu0 0.0
    %1385 = vmatpush1.msra.mxu0 0.0
    %1386 = vmatprep.subr.mxu0 0.0
    %1387 = vmatpush1.msra.mxu0 0.0
    %1388 = vmatprep.subr.mxu0 0.0
    %1389 = vmatpush1.msra.mxu0 0.0
    %1390 = vmatprep.subr.mxu0 0.0
    %1391 = vmatpush1.msra.mxu0 0.0
    %1392 = vmatprep.subr.mxu0 0.0
    %1393 = vmatpush1.msra.mxu0 0.0
    %1394 = vmatprep.subr.mxu0 0.0
    %1395 = vmatpush1.msra.mxu0 0.0
    %1396 = vmatprep.subr.mxu0 0.0
    %1397 = vmatpush1.msra.mxu0 0.0
    %1398 = vmatprep.subr.mxu0 0.0
    %1399 = vmatpush1.msra.mxu0 0.0
    %1400 = vmatprep.subr.mxu0 0.0
    %1401 = vmatpush1.msra.mxu0 0.0
    %1402 = vmatprep.subr.mxu0 0.0
    %1403 = vmatpush1.msra.mxu0 0.0
    %1404 = vmatprep.mubr.f32.mxu0 0.0
    %1405 = vmatmul.mubr.f32.gmra.mrb[0].mxu0 %v1267
    %v1406 = vpop.f32.mrb[0].mxu0
    %v1407 = vadd.f32 0.0, %v1406
    %v1408 = vpop.f32.mrb[0].mxu0
    %v1409 = vadd.f32 0.0, %v1408
    %1410 = vdwg.mxu0
    %v1415 = vrot.slane %v1336, 3
    %v1416 = vrot.slane %v1338, 3
    %v1417 = vrot.slane %v1407, 3
    %v1418 = vrot.slane %v1409, 3
    %v1423 = vadd.f32 %v206, %v1415
    %v1424 = vadd.f32 %v208, %v1416
    %v1425 = vadd.f32 %v277, %v1417
    %v1426 = vadd.f32 %v279, %v1418
    %v1427 = vxor.u32 %v1423, 2147483648
    %v1428 = vxor.u32 %v1424, 2147483648
    %v1429 = vxor.u32 %v1426, 2147483648
    %v1430 = vmul.f32 %v1427, 1.442695
    %v1431 = vpow.pop %v1430
    %v1432 = vmul.f32 %v1428, 1.442695
    %v1433 = vpow.pop %v1432
    %v1434 = vmul.f32 %v1429, 1.442695
    %v1435 = vpow.pop %v1434
    %v1436 = vadd.f32 %v1431, 1.0
    %v1437 = vadd.f32 %v1433, 1.0
    %v1438 = vadd.f32 %v1435, 1.0
    %v1439 = vrcp.pop %v1436
    %v1440 = vmul.f32 1.0, %v1439
    %v1441 = vrcp.pop %v1437
    %v1442 = vmul.f32 1.0, %v1441
    %v1443 = vrcp.pop %v1438
    %v1444 = vmul.f32 1.0, %v1443
    %v1445 = vtanh.pop %v1425
    %v1447 = vrot.slane %v1263, 7
    %v1449 = vmul.f32 %v1442, %v1447
    %v1450 = vmul.f32 %v1440, %v1445
    %v1451 = vadd.f32 %v1449, %v1450
    %v1452 = vtanh.pop %v1451
    %v1453 = vmul.f32 %v1444, %v1452
    %v1455 = vrot.slane %v1453, 5
    %1457 = vmatprep.subr.mxu0 %v282
    %1458 = vmatpush1.msra.mxu0 %v281
    %1459 = vmatprep.subr.mxu0 %v286
    %1460 = vmatpush1.msra.mxu0 %v285
    %1461 = vmatprep.subr.mxu0 %v290
    %1462 = vmatpush1.msra.mxu0 %v289
    %1463 = vmatprep.subr.mxu0 %v294
    %1464 = vmatpush1.msra.mxu0 %v293
    %1465 = vmatprep.subr.mxu0 %v298
    %1466 = vmatpush1.msra.mxu0 %v297
    %1467 = vmatprep.subr.mxu0 %v302
    %1468 = vmatpush1.msra.mxu0 %v301
    %1469 = vmatprep.subr.mxu0 %v306
    %1470 = vmatpush1.msra.mxu0 %v305
    %1471 = vmatprep.subr.mxu0 %v310
    %1472 = vmatpush1.msra.mxu0 %v309
    %1473 = vmatprep.subr.mxu0 %v314
    %1474 = vmatpush1.msra.mxu0 %v313
    %1475 = vmatprep.subr.mxu0 %v318
    %1476 = vmatpush1.msra.mxu0 %v317
    %1477 = vmatprep.subr.mxu0 %v322
    %1478 = vmatpush1.msra.mxu0 %v321
    %1479 = vmatprep.subr.mxu0 %v326
    %1480 = vmatpush1.msra.mxu0 %v325
    %1481 = vmatprep.subr.mxu0 %v330
    %1482 = vmatpush1.msra.mxu0 %v329
    %1483 = vmatprep.subr.mxu0 %v334
    %1484 = vmatpush1.msra.mxu0 %v333
    %1485 = vmatprep.subr.mxu0 %v338
    %1486 = vmatpush1.msra.mxu0 %v337
    %1487 = vmatprep.subr.mxu0 %v342
    %1488 = vmatpush1.msra.mxu0 %v341
    %1489 = vmatprep.subr.mxu0 0.0
    %1490 = vmatpush1.msra.mxu0 0.0
    %1491 = vmatprep.subr.mxu0 0.0
    %1492 = vmatpush1.msra.mxu0 0.0
    %1493 = vmatprep.subr.mxu0 0.0
    %1494 = vmatpush1.msra.mxu0 0.0
    %1495 = vmatprep.subr.mxu0 0.0
    %1496 = vmatpush1.msra.mxu0 0.0
    %1497 = vmatprep.subr.mxu0 0.0
    %1498 = vmatpush1.msra.mxu0 0.0
    %1499 = vmatprep.subr.mxu0 0.0
    %1500 = vmatpush1.msra.mxu0 0.0
    %1501 = vmatprep.subr.mxu0 0.0
    %1502 = vmatpush1.msra.mxu0 0.0
    %1503 = vmatprep.subr.mxu0 0.0
    %1504 = vmatpush1.msra.mxu0 0.0
    %1505 = vmatprep.subr.mxu0 0.0
    %1506 = vmatpush1.msra.mxu0 0.0
    %1507 = vmatprep.subr.mxu0 0.0
    %1508 = vmatpush1.msra.mxu0 0.0
    %1509 = vmatprep.subr.mxu0 0.0
    %1510 = vmatpush1.msra.mxu0 0.0
    %1511 = vmatprep.subr.mxu0 0.0
    %1512 = vmatpush1.msra.mxu0 0.0
    %1513 = vmatprep.subr.mxu0 0.0
    %1514 = vmatpush1.msra.mxu0 0.0
    %1515 = vmatprep.subr.mxu0 0.0
    %1516 = vmatpush1.msra.mxu0 0.0
    %1517 = vmatprep.subr.mxu0 0.0
    %1518 = vmatpush1.msra.mxu0 0.0
    %1519 = vmatprep.subr.mxu0 0.0
    %1520 = vmatpush1.msra.mxu0 0.0
    %1521 = vmatprep.mubr.f32.mxu0 0.0
    %1522 = vmatmul.mubr.f32.gmra.mrb[0].mxu0 %v1455
    %v1523 = vpop.f32.mrb[0].mxu0
    %v1524 = vadd.f32 0.0, %v1523
    %v1525 = vpop.f32.mrb[0].mxu0
    %v1526 = vadd.f32 0.0, %v1525
    %1527 = vdwg.mxu0
    %1528 = vmatprep.subr.mxu0 %v284
    %1529 = vmatpush1.msra.mxu0 %v283
    %1530 = vmatprep.subr.mxu0 %v288
    %1531 = vmatpush1.msra.mxu0 %v287
    %1532 = vmatprep.subr.mxu0 %v292
    %1533 = vmatpush1.msra.mxu0 %v291
    %1534 = vmatprep.subr.mxu0 %v296
    %1535 = vmatpush1.msra.mxu0 %v295
    %1536 = vmatprep.subr.mxu0 %v300
    %1537 = vmatpush1.msra.mxu0 %v299
    %1538 = vmatprep.subr.mxu0 %v304
    %1539 = vmatpush1.msra.mxu0 %v303
    %1540 = vmatprep.subr.mxu0 %v308
    %1541 = vmatpush1.msra.mxu0 %v307
    %1542 = vmatprep.subr.mxu0 %v312
    %1543 = vmatpush1.msra.mxu0 %v311
    %1544 = vmatprep.subr.mxu0 %v316
    %1545 = vmatpush1.msra.mxu0 %v315
    %1546 = vmatprep.subr.mxu0 %v320
    %1547 = vmatpush1.msra.mxu0 %v319
    %1548 = vmatprep.subr.mxu0 %v324
    %1549 = vmatpush1.msra.mxu0 %v323
    %1550 = vmatprep.subr.mxu0 %v328
    %1551 = vmatpush1.msra.mxu0 %v327
    %1552 = vmatprep.subr.mxu0 %v332
    %1553 = vmatpush1.msra.mxu0 %v331
    %1554 = vmatprep.subr.mxu0 %v336
    %1555 = vmatpush1.msra.mxu0 %v335
    %1556 = vmatprep.subr.mxu0 %v340
    %1557 = vmatpush1.msra.mxu0 %v339
    %1558 = vmatprep.subr.mxu0 %v344
    %1559 = vmatpush1.msra.mxu0 %v343
    %1560 = vmatprep.subr.mxu0 0.0
    %1561 = vmatpush1.msra.mxu0 0.0
    %1562 = vmatprep.subr.mxu0 0.0
    %1563 = vmatpush1.msra.mxu0 0.0
    %1564 = vmatprep.subr.mxu0 0.0
    %1565 = vmatpush1.msra.mxu0 0.0
    %1566 = vmatprep.subr.mxu0 0.0
    %1567 = vmatpush1.msra.mxu0 0.0
    %1568 = vmatprep.subr.mxu0 0.0
    %1569 = vmatpush1.msra.mxu0 0.0
    %1570 = vmatprep.subr.mxu0 0.0
    %1571 = vmatpush1.msra.mxu0 0.0
    %1572 = vmatprep.subr.mxu0 0.0
    %1573 = vmatpush1.msra.mxu0 0.0
    %1574 = vmatprep.subr.mxu0 0.0
    %1575 = vmatpush1.msra.mxu0 0.0
    %1576 = vmatprep.subr.mxu0 0.0
    %1577 = vmatpush1.msra.mxu0 0.0
    %1578 = vmatprep.subr.mxu0 0.0
    %1579 = vmatpush1.msra.mxu0 0.0
    %1580 = vmatprep.subr.mxu0 0.0
    %1581 = vmatpush1.msra.mxu0 0.0
    %1582 = vmatprep.subr.mxu0 0.0
    %1583 = vmatpush1.msra.mxu0 0.0
    %1584 = vmatprep.subr.mxu0 0.0
    %1585 = vmatpush1.msra.mxu0 0.0
    %1586 = vmatprep.subr.mxu0 0.0
    %1587 = vmatpush1.msra.mxu0 0.0
    %1588 = vmatprep.subr.mxu0 0.0
    %1589 = vmatpush1.msra.mxu0 0.0
    %1590 = vmatprep.subr.mxu0 0.0
    %1591 = vmatpush1.msra.mxu0 0.0
    %1592 = vmatprep.mubr.f32.mxu0 0.0
    %1593 = vmatmul.mubr.f32.gmra.mrb[0].mxu0 %v1455
    %v1594 = vpop.f32.mrb[0].mxu0
    %v1595 = vadd.f32 0.0, %v1594
    %v1596 = vpop.f32.mrb[0].mxu0
    %v1597 = vadd.f32 0.0, %v1596
    %1598 = vdwg.mxu0
    %v1603 = vrot.slane %v1524, 2
    %v1604 = vrot.slane %v1526, 2
    %v1605 = vrot.slane %v1595, 2
    %v1606 = vrot.slane %v1597, 2
    %v1611 = vadd.f32 %v206, %v1603
    %v1612 = vadd.f32 %v208, %v1604
    %v1613 = vadd.f32 %v277, %v1605
    %v1614 = vadd.f32 %v279, %v1606
    %v1615 = vxor.u32 %v1611, 2147483648
    %v1616 = vxor.u32 %v1612, 2147483648
    %v1617 = vxor.u32 %v1614, 2147483648
    %v1618 = vmul.f32 %v1615, 1.442695
    %v1619 = vpow.pop %v1618
    %v1620 = vmul.f32 %v1616, 1.442695
    %v1621 = vpow.pop %v1620
    %v1622 = vmul.f32 %v1617, 1.442695
    %v1623 = vpow.pop %v1622
    %v1624 = vadd.f32 %v1619, 1.0
    %v1625 = vadd.f32 %v1621, 1.0
    %v1626 = vadd.f32 %v1623, 1.0
    %v1627 = vrcp.pop %v1624
    %v1628 = vmul.f32 1.0, %v1627
    %v1629 = vrcp.pop %v1625
    %v1630 = vmul.f32 1.0, %v1629
    %v1631 = vrcp.pop %v1626
    %v1632 = vmul.f32 1.0, %v1631
    %v1633 = vtanh.pop %v1613
    %v1635 = vrot.slane %v1451, 7
    %v1637 = vmul.f32 %v1630, %v1635
    %v1638 = vmul.f32 %v1628, %v1633
    %v1639 = vadd.f32 %v1637, %v1638
    %v1640 = vtanh.pop %v1639
    %v1641 = vmul.f32 %v1632, %v1640
    %v1643 = vrot.slane %v1641, 6
    %1645 = vmatprep.subr.mxu0 %v282
    %1646 = vmatpush1.msra.mxu0 %v281
    %1647 = vmatprep.subr.mxu0 %v286
    %1648 = vmatpush1.msra.mxu0 %v285
    %1649 = vmatprep.subr.mxu0 %v290
    %1650 = vmatpush1.msra.mxu0 %v289
    %1651 = vmatprep.subr.mxu0 %v294
    %1652 = vmatpush1.msra.mxu0 %v293
    %1653 = vmatprep.subr.mxu0 %v298
    %1654 = vmatpush1.msra.mxu0 %v297
    %1655 = vmatprep.subr.mxu0 %v302
    %1656 = vmatpush1.msra.mxu0 %v301
    %1657 = vmatprep.subr.mxu0 %v306
    %1658 = vmatpush1.msra.mxu0 %v305
    %1659 = vmatprep.subr.mxu0 %v310
    %1660 = vmatpush1.msra.mxu0 %v309
    %1661 = vmatprep.subr.mxu0 %v314
    %1662 = vmatpush1.msra.mxu0 %v313
    %1663 = vmatprep.subr.mxu0 %v318
    %1664 = vmatpush1.msra.mxu0 %v317
    %1665 = vmatprep.subr.mxu0 %v322
    %1666 = vmatpush1.msra.mxu0 %v321
    %1667 = vmatprep.subr.mxu0 %v326
    %1668 = vmatpush1.msra.mxu0 %v325
    %1669 = vmatprep.subr.mxu0 %v330
    %1670 = vmatpush1.msra.mxu0 %v329
    %1671 = vmatprep.subr.mxu0 %v334
    %1672 = vmatpush1.msra.mxu0 %v333
    %1673 = vmatprep.subr.mxu0 %v338
    %1674 = vmatpush1.msra.mxu0 %v337
    %1675 = vmatprep.subr.mxu0 %v342
    %1676 = vmatpush1.msra.mxu0 %v341
    %1677 = vmatprep.subr.mxu0 0.0
    %1678 = vmatpush1.msra.mxu0 0.0
    %1679 = vmatprep.subr.mxu0 0.0
    %1680 = vmatpush1.msra.mxu0 0.0
    %1681 = vmatprep.subr.mxu0 0.0
    %1682 = vmatpush1.msra.mxu0 0.0
    %1683 = vmatprep.subr.mxu0 0.0
    %1684 = vmatpush1.msra.mxu0 0.0
    %1685 = vmatprep.subr.mxu0 0.0
    %1686 = vmatpush1.msra.mxu0 0.0
    %1687 = vmatprep.subr.mxu0 0.0
    %1688 = vmatpush1.msra.mxu0 0.0
    %1689 = vmatprep.subr.mxu0 0.0
    %1690 = vmatpush1.msra.mxu0 0.0
    %1691 = vmatprep.subr.mxu0 0.0
    %1692 = vmatpush1.msra.mxu0 0.0
    %1693 = vmatprep.subr.mxu0 0.0
    %1694 = vmatpush1.msra.mxu0 0.0
    %1695 = vmatprep.subr.mxu0 0.0
    %1696 = vmatpush1.msra.mxu0 0.0
    %1697 = vmatprep.subr.mxu0 0.0
    %1698 = vmatpush1.msra.mxu0 0.0
    %1699 = vmatprep.subr.mxu0 0.0
    %1700 = vmatpush1.msra.mxu0 0.0
    %1701 = vmatprep.subr.mxu0 0.0
    %1702 = vmatpush1.msra.mxu0 0.0
    %1703 = vmatprep.subr.mxu0 0.0
    %1704 = vmatpush1.msra.mxu0 0.0
    %1705 = vmatprep.subr.mxu0 0.0
    %1706 = vmatpush1.msra.mxu0 0.0
    %1707 = vmatprep.subr.mxu0 0.0
    %1708 = vmatpush1.msra.mxu0 0.0
    %1709 = vmatprep.mubr.f32.mxu0 0.0
    %1710 = vmatmul.mubr.f32.gmra.mrb[0].mxu0 %v1643
    %v1711 = vpop.f32.mrb[0].mxu0
    %v1712 = vadd.f32 0.0, %v1711
    %v1713 = vpop.f32.mrb[0].mxu0
    %v1714 = vadd.f32 0.0, %v1713
    %1715 = vdwg.mxu0
    %1716 = vmatprep.subr.mxu0 %v284
    %1717 = vmatpush1.msra.mxu0 %v283
    %1718 = vmatprep.subr.mxu0 %v288
    %1719 = vmatpush1.msra.mxu0 %v287
    %1720 = vmatprep.subr.mxu0 %v292
    %1721 = vmatpush1.msra.mxu0 %v291
    %1722 = vmatprep.subr.mxu0 %v296
    %1723 = vmatpush1.msra.mxu0 %v295
    %1724 = vmatprep.subr.mxu0 %v300
    %1725 = vmatpush1.msra.mxu0 %v299
    %1726 = vmatprep.subr.mxu0 %v304
    %1727 = vmatpush1.msra.mxu0 %v303
    %1728 = vmatprep.subr.mxu0 %v308
    %1729 = vmatpush1.msra.mxu0 %v307
    %1730 = vmatprep.subr.mxu0 %v312
    %1731 = vmatpush1.msra.mxu0 %v311
    %1732 = vmatprep.subr.mxu0 %v316
    %1733 = vmatpush1.msra.mxu0 %v315
    %1734 = vmatprep.subr.mxu0 %v320
    %1735 = vmatpush1.msra.mxu0 %v319
    %1736 = vmatprep.subr.mxu0 %v324
    %1737 = vmatpush1.msra.mxu0 %v323
    %1738 = vmatprep.subr.mxu0 %v328
    %1739 = vmatpush1.msra.mxu0 %v327
    %1740 = vmatprep.subr.mxu0 %v332
    %1741 = vmatpush1.msra.mxu0 %v331
    %1742 = vmatprep.subr.mxu0 %v336
    %1743 = vmatpush1.msra.mxu0 %v335
    %1744 = vmatprep.subr.mxu0 %v340
    %1745 = vmatpush1.msra.mxu0 %v339
    %1746 = vmatprep.subr.mxu0 %v344
    %1747 = vmatpush1.msra.mxu0 %v343
    %1748 = vmatprep.subr.mxu0 0.0
    %1749 = vmatpush1.msra.mxu0 0.0
    %1750 = vmatprep.subr.mxu0 0.0
    %1751 = vmatpush1.msra.mxu0 0.0
    %1752 = vmatprep.subr.mxu0 0.0
    %1753 = vmatpush1.msra.mxu0 0.0
    %1754 = vmatprep.subr.mxu0 0.0
    %1755 = vmatpush1.msra.mxu0 0.0
    %1756 = vmatprep.subr.mxu0 0.0
    %1757 = vmatpush1.msra.mxu0 0.0
    %1758 = vmatprep.subr.mxu0 0.0
    %1759 = vmatpush1.msra.mxu0 0.0
    %1760 = vmatprep.subr.mxu0 0.0
    %1761 = vmatpush1.msra.mxu0 0.0
    %1762 = vmatprep.subr.mxu0 0.0
    %1763 = vmatpush1.msra.mxu0 0.0
    %1764 = vmatprep.subr.mxu0 0.0
    %1765 = vmatpush1.msra.mxu0 0.0
    %1766 = vmatprep.subr.mxu0 0.0
    %1767 = vmatpush1.msra.mxu0 0.0
    %1768 = vmatprep.subr.mxu0 0.0
    %1769 = vmatpush1.msra.mxu0 0.0
    %1770 = vmatprep.subr.mxu0 0.0
    %1771 = vmatpush1.msra.mxu0 0.0
    %1772 = vmatprep.subr.mxu0 0.0
    %1773 = vmatpush1.msra.mxu0 0.0
    %1774 = vmatprep.subr.mxu0 0.0
    %1775 = vmatpush1.msra.mxu0 0.0
    %1776 = vmatprep.subr.mxu0 0.0
    %1777 = vmatpush1.msra.mxu0 0.0
    %1778 = vmatprep.subr.mxu0 0.0
    %1779 = vmatpush1.msra.mxu0 0.0
    %1780 = vmatprep.mubr.f32.mxu0 0.0
    %1781 = vmatmul.mubr.f32.gmra.mrb[0].mxu0 %v1643
    %v1782 = vpop.f32.mrb[0].mxu0
    %v1783 = vadd.f32 0.0, %v1782
    %v1784 = vpop.f32.mrb[0].mxu0
    %v1785 = vadd.f32 0.0, %v1784
    %1786 = vdwg.mxu0
    %v1791 = vrot.slane %v1712, 1
    %v1792 = vrot.slane %v1714, 1
    %v1793 = vrot.slane %v1783, 1
    %v1794 = vrot.slane %v1785, 1
    %v1799 = vadd.f32 %v206, %v1791
    %v1800 = vadd.f32 %v208, %v1792
    %v1801 = vadd.f32 %v277, %v1793
    %v1802 = vadd.f32 %v279, %v1794
    %v1803 = vxor.u32 %v1799, 2147483648
    %v1804 = vxor.u32 %v1800, 2147483648
    %v1805 = vxor.u32 %v1802, 2147483648
    %v1806 = vmul.f32 %v1803, 1.442695
    %v1807 = vpow.pop %v1806
    %v1808 = vmul.f32 %v1804, 1.442695
    %v1809 = vpow.pop %v1808
    %v1810 = vmul.f32 %v1805, 1.442695
    %v1811 = vpow.pop %v1810
    %v1812 = vadd.f32 %v1807, 1.0
    %v1813 = vadd.f32 %v1809, 1.0
    %v1814 = vadd.f32 %v1811, 1.0
    %v1815 = vrcp.pop %v1812
    %v1816 = vmul.f32 1.0, %v1815
    %v1817 = vrcp.pop %v1813
    %v1818 = vmul.f32 1.0, %v1817
    %v1819 = vrcp.pop %v1814
    %v1820 = vmul.f32 1.0, %v1819
    %v1821 = vtanh.pop %v1801
    %v1823 = vrot.slane %v1639, 7
    %v1825 = vmul.f32 %v1818, %v1823
    %v1826 = vmul.f32 %v1816, %v1821
    %v1827 = vadd.f32 %v1825, %v1826
    %v1828 = vtanh.pop %v1827
    %v1829 = vmul.f32 %v1820, %v1828
    %vm1830 = vcmask 1040384
    %v1831 = vsel %vm1830, %v516, %v701
    %vm1832 = vcmask 1041408
    %v1833 = vsel %vm1832, %v1831, %v889
    %vm1834 = vcmask 1042432
    %v1835 = vsel %vm1834, %v1833, %v1077
    %vm1836 = vcmask 1043456
    %v1837 = vsel %vm1836, %v1835, %v1265
    %vm1838 = vcmask 1044480
    %v1839 = vsel %vm1838, %v1837, %v1453
    %vm1840 = vcmask 1045504
    %v1841 = vsel %vm1840, %v1839, %v1641
    %vm1842 = vcmask 1046528
    %v1843 = vsel %vm1842, %v1841, %v1829
    %v1844 = vsel %vm1830, %v514, %v699
    %v1845 = vsel %vm1832, %v1844, %v887
    %v1846 = vsel %vm1834, %v1845, %v1075
    %v1847 = vsel %vm1836, %v1846, %v1263
    %v1848 = vsel %vm1838, %v1847, %v1451
    %v1849 = vsel %vm1840, %v1848, %v1639
    %v1850 = vsel %vm1842, %v1849, %v1827
    %v1851 = vld [vmem:[#allocation7] sm:$0xff]
    %v1852 = vld [vmem:[#allocation7 + $0x8] sm:$0xff]
    %v1853 = vld [vmem:[#allocation7 + $0x10] sm:$0xff]
    %v1854 = vld [vmem:[#allocation7 + $0x18] sm:$0xff]
    %v1855 = vld [vmem:[#allocation7 + $0x20] sm:$0xff]
    %v1856 = vld [vmem:[#allocation7 + $0x28] sm:$0xff]
    %v1857 = vld [vmem:[#allocation7 + $0x30] sm:$0xff]
    %v1858 = vld [vmem:[#allocation7 + $0x38] sm:$0xff]
    %v1859 = vld [vmem:[#allocation7 + $0x40] sm:$0xff]
    %v1860 = vld [vmem:[#allocation7 + $0x48] sm:$0xff]
    %v1861 = vld [vmem:[#allocation7 + $0x50] sm:$0xff]
    %v1862 = vld [vmem:[#allocation7 + $0x58] sm:$0xff]
    %v1863 = vld [vmem:[#allocation7 + $0x60] sm:$0xff]
    %v1864 = vld [vmem:[#allocation7 + $0x68] sm:$0xff]
    %v1865 = vld [vmem:[#allocation7 + $0x70] sm:$0xff]
    %v1866 = vld [vmem:[#allocation7 + $0x78] sm:$0xff]
    %v1867 = vld [vmem:[#allocation8] sm:$0xff]
    %v1868 = vld [vmem:[#allocation8 + $0x8] sm:$0xff]
    %v1869 = vld [vmem:[#allocation8 + $0x10] sm:$0xff]
    %v1870 = vld [vmem:[#allocation8 + $0x18] sm:$0xff]
    %v1871 = vld [vmem:[#allocation8 + $0x20] sm:$0xff]
    %v1872 = vld [vmem:[#allocation8 + $0x28] sm:$0xff]
    %v1873 = vld [vmem:[#allocation8 + $0x30] sm:$0xff]
    %v1874 = vld [vmem:[#allocation8 + $0x38] sm:$0xff]
    %v1875 = vld [vmem:[#allocation8 + $0x40] sm:$0xff]
    %v1876 = vld [vmem:[#allocation8 + $0x48] sm:$0xff]
    %v1877 = vld [vmem:[#allocation8 + $0x50] sm:$0xff]
    %v1878 = vld [vmem:[#allocation8 + $0x58] sm:$0xff]
    %v1879 = vld [vmem:[#allocation8 + $0x60] sm:$0xff]
    %v1880 = vld [vmem:[#allocation8 + $0x68] sm:$0xff]
    %v1881 = vld [vmem:[#allocation8 + $0x70] sm:$0xff]
    %v1882 = vld [vmem:[#allocation8 + $0x78] sm:$0xff]
    %1883 = vmatprep.subr.mxu0 0.0
    %1884 = vmatpush1.msra.mxu0 %v1867
    %1885 = vmatprep.subr.mxu0 0.0
    %1886 = vmatpush1.msra.mxu0 %v1868
    %1887 = vmatprep.subr.mxu0 0.0
    %1888 = vmatpush1.msra.mxu0 %v1869
    %1889 = vmatprep.subr.mxu0 0.0
    %1890 = vmatpush1.msra.mxu0 %v1870
    %1891 = vmatprep.subr.mxu0 0.0
    %1892 = vmatpush1.msra.mxu0 %v1871
    %1893 = vmatprep.subr.mxu0 0.0
    %1894 = vmatpush1.msra.mxu0 %v1872
    %1895 = vmatprep.subr.mxu0 0.0
    %1896 = vmatpush1.msra.mxu0 %v1873
    %1897 = vmatprep.subr.mxu0 0.0
    %1898 = vmatpush1.msra.mxu0 %v1874
    %1899 = vmatprep.subr.mxu0 0.0
    %1900 = vmatpush1.msra.mxu0 %v1875
    %1901 = vmatprep.subr.mxu0 0.0
    %1902 = vmatpush1.msra.mxu0 %v1876
    %1903 = vmatprep.subr.mxu0 0.0
    %1904 = vmatpush1.msra.mxu0 %v1877
    %1905 = vmatprep.subr.mxu0 0.0
    %1906 = vmatpush1.msra.mxu0 %v1878
    %1907 = vmatprep.subr.mxu0 0.0
    %1908 = vmatpush1.msra.mxu0 %v1879
    %1909 = vmatprep.subr.mxu0 0.0
    %1910 = vmatpush1.msra.mxu0 %v1880
    %1911 = vmatprep.subr.mxu0 0.0
    %1912 = vmatpush1.msra.mxu0 %v1881
    %1913 = vmatprep.subr.mxu0 0.0
    %1914 = vmatpush1.msra.mxu0 %v1882
    %1915 = vmatprep.subr.mxu0 0.0
    %1916 = vmatpush1.msra.mxu0 0.0
    %1917 = vmatprep.subr.mxu0 0.0
    %1918 = vmatpush1.msra.mxu0 0.0
    %1919 = vmatprep.subr.mxu0 0.0
    %1920 = vmatpush1.msra.mxu0 0.0
    %1921 = vmatprep.subr.mxu0 0.0
    %1922 = vmatpush1.msra.mxu0 0.0
    %1923 = vmatprep.subr.mxu0 0.0
    %1924 = vmatpush1.msra.mxu0 0.0
    %1925 = vmatprep.subr.mxu0 0.0
    %1926 = vmatpush1.msra.mxu0 0.0
    %1927 = vmatprep.subr.mxu0 0.0
    %1928 = vmatpush1.msra.mxu0 0.0
    %1929 = vmatprep.subr.mxu0 0.0
    %1930 = vmatpush1.msra.mxu0 0.0
    %1931 = vmatprep.subr.mxu0 0.0
    %1932 = vmatpush1.msra.mxu0 0.0
    %1933 = vmatprep.subr.mxu0 0.0
    %1934 = vmatpush1.msra.mxu0 0.0
    %1935 = vmatprep.subr.mxu0 0.0
    %1936 = vmatpush1.msra.mxu0 0.0
    %1937 = vmatprep.subr.mxu0 0.0
    %1938 = vmatpush1.msra.mxu0 0.0
    %1939 = vmatprep.subr.mxu0 0.0
    %1940 = vmatpush1.msra.mxu0 0.0
    %1941 = vmatprep.subr.mxu0 0.0
    %1942 = vmatpush1.msra.mxu0 0.0
    %1943 = vmatprep.subr.mxu0 0.0
    %1944 = vmatpush1.msra.mxu0 0.0
    %1945 = vmatprep.subr.mxu0 0.0
    %1946 = vmatpush1.msra.mxu0 0.0
    %1947 = vmatprep.mubr.f32.mxu0 0.0
    %1948 = vmatmul.mubr.f32.gmra.mrb[0].mxu0 %v1850
    %v1949 = vpop.f32.mrb[0].mxu0
    %v1950 = vadd.f32 0.0, %v1949
    %v1951 = vpop.f32.mrb[0].mxu0
    %1952 = vdwg.mxu0
    %1953 = vmatprep.subr.mxu0 0.0
    %1954 = vmatpush1.msra.mxu0 %v1851
    %1955 = vmatprep.subr.mxu0 0.0
    %1956 = vmatpush1.msra.mxu0 %v1852
    %1957 = vmatprep.subr.mxu0 0.0
    %1958 = vmatpush1.msra.mxu0 %v1853
    %1959 = vmatprep.subr.mxu0 0.0
    %1960 = vmatpush1.msra.mxu0 %v1854
    %1961 = vmatprep.subr.mxu0 0.0
    %1962 = vmatpush1.msra.mxu0 %v1855
    %1963 = vmatprep.subr.mxu0 0.0
    %1964 = vmatpush1.msra.mxu0 %v1856
    %1965 = vmatprep.subr.mxu0 0.0
    %1966 = vmatpush1.msra.mxu0 %v1857
    %1967 = vmatprep.subr.mxu0 0.0
    %1968 = vmatpush1.msra.mxu0 %v1858
    %1969 = vmatprep.subr.mxu0 0.0
    %1970 = vmatpush1.msra.mxu0 %v1859
    %1971 = vmatprep.subr.mxu0 0.0
    %1972 = vmatpush1.msra.mxu0 %v1860
    %1973 = vmatprep.subr.mxu0 0.0
    %1974 = vmatpush1.msra.mxu0 %v1861
    %1975 = vmatprep.subr.mxu0 0.0
    %1976 = vmatpush1.msra.mxu0 %v1862
    %1977 = vmatprep.subr.mxu0 0.0
    %1978 = vmatpush1.msra.mxu0 %v1863
    %1979 = vmatprep.subr.mxu0 0.0
    %1980 = vmatpush1.msra.mxu0 %v1864
    %1981 = vmatprep.subr.mxu0 0.0
    %1982 = vmatpush1.msra.mxu0 %v1865
    %1983 = vmatprep.subr.mxu0 0.0
    %1984 = vmatpush1.msra.mxu0 %v1866
    %1985 = vmatprep.subr.mxu0 0.0
    %1986 = vmatpush1.msra.mxu0 0.0
    %1987 = vmatprep.subr.mxu0 0.0
    %1988 = vmatpush1.msra.mxu0 0.0
    %1989 = vmatprep.subr.mxu0 0.0
    %1990 = vmatpush1.msra.mxu0 0.0
    %1991 = vmatprep.subr.mxu0 0.0
    %1992 = vmatpush1.msra.mxu0 0.0
    %1993 = vmatprep.subr.mxu0 0.0
    %1994 = vmatpush1.msra.mxu0 0.0
    %1995 = vmatprep.subr.mxu0 0.0
    %1996 = vmatpush1.msra.mxu0 0.0
    %1997 = vmatprep.subr.mxu0 0.0
    %1998 = vmatpush1.msra.mxu0 0.0
    %1999 = vmatprep.subr.mxu0 0.0
    %2000 = vmatpush1.msra.mxu0 0.0
    %2001 = vmatprep.subr.mxu0 0.0
    %2002 = vmatpush1.msra.mxu0 0.0
    %2003 = vmatprep.subr.mxu0 0.0
    %2004 = vmatpush1.msra.mxu0 0.0
    %2005 = vmatprep.subr.mxu0 0.0
    %2006 = vmatpush1.msra.mxu0 0.0
    %2007 = vmatprep.subr.mxu0 0.0
    %2008 = vmatpush1.msra.mxu0 0.0
    %2009 = vmatprep.subr.mxu0 0.0
    %2010 = vmatpush1.msra.mxu0 0.0
    %2011 = vmatprep.subr.mxu0 0.0
    %2012 = vmatpush1.msra.mxu0 0.0
    %2013 = vmatprep.subr.mxu0 0.0
    %2014 = vmatpush1.msra.mxu0 0.0
    %2015 = vmatprep.subr.mxu0 0.0
    %2016 = vmatpush1.msra.mxu0 0.0
    %2017 = vmatprep.mubr.f32.mxu0 0.0
    %2018 = vmatmul.mubr.f32.gmra.mrb[0].mxu0 %v1843
    %v2019 = vpop.f32.mrb[0].mxu0
    %v2020 = vadd.f32 %v1950, %v2019
    %v2021 = vpop.f32.mrb[0].mxu0
    %2022 = vdwg.mxu0
    %v2023 = vld [vmem:[%s6] sm:$0x1]
    %v2025 = vlaneseq
    %v2026 = vshrl.u32 %v2025, 7
    %v2027 = vsub.s32 0, %v2026
    %v2028 = vrot.slane %v2023, %v2027
    %v2030 = vadd.f32 %v2020, %v2028
    %v2031 = vlaneseq
    %v2032 = vand.u32 %v2031, 127
    %vm2033 = vcmp.lt.s32.totalorder %v2032, 5
    %v2034 = vsel %vm2033, %v2030, -1e+30
    %2035 = vmax.xlane.f32.xlu0 %v2034
    %v2036 = vpop.xlane.xlu0 %2035
    %v2037 = vsub.f32 %v2034, %v2036
    %v2038 = vmul.f32 %v2037, 1.442695
    %v2039 = vpow.pop %v2038
    %2040 = vadd.xlane.f32.xlu0 %v2039
    %v2041 = vpop.xlane.xlu0 %2040
    %v2042 = vrcp.pop %v2041
    %v2043 = vmul.f32 %v2039, %v2042
    %vm2044 = vcmp.ge.f32.partialorder %v2034, %v2036
    %v2045 = vsel %vm2044, %v2032, 128
    %v2046 = vand.u32 %v2045, 65535
    %v2047 = vshra.s32 %v2045, 16
    %v2048 = vcvt.s32.f32 %v2046
    %v2049 = vcvt.s32.f32 %v2047
    %2050 = vmin.xlane.f32.xlu0 %v2049
    %v2051 = vpop.xlane.xlu0 %2050
    %vm2052 = vcmp.eq.f32.partialorder %v2049, %v2051
    %v2053 = vsel %vm2052, %v2048, inf
    %2054 = vmin.xlane.f32.xlu0 %v2053
    %v2055 = vpop.xlane.xlu0 %2054
    %v2056 = vcvt.f32.s32 %v2055
    %v2057 = vcvt.f32.s32 %v2051
    %v2058 = vshll.u32 %v2057, 16
    %v2059 = vadd.s32 %v2058, %v2056
    %v2060 = vlog2.pop %v2041
    %v2061 = vmul.f32 %v2060, 0.6931472
    %v2062 = vsub.f32 0.0, %v2061
    %v2063 = vlaneseq
    %v2064 = vshrl.u32 %v2063, 7
    %v2065 = vadd.s32 %v2064, 8
    %v2066 = vadd.s32 %v2064, 16
    %v2067 = vadd.s32 %v2064, 24
    %v2068 = vadd.s32 %v2064, 32
    %v2069 = vadd.s32 %v2064, 40
    %v2070 = vadd.s32 %v2064, 48
    %v2071 = vadd.s32 %v2064, 56
    %v2072 = vadd.s32 %v2064, 64
    %v2073 = vadd.s32 %v2064, 72
    %v2074 = vadd.s32 %v2064, 80
    %v2075 = vadd.s32 %v2064, 88
    %v2076 = vadd.s32 %v2064, 96
    %v2077 = vadd.s32 %v2064, 104
    %v2078 = vadd.s32 %v2064, 112
    %v2079 = vadd.s32 %v2064, 120
    %vm2080 = vcmp.le.s32.totalorder %v2064, %v2032
    %vm2081 = vcmp.le.s32.totalorder %v2065, %v2032
    %vm2082 = vcmp.le.s32.totalorder %v2066, %v2032
    %vm2083 = vcmp.le.s32.totalorder %v2067, %v2032
    %vm2084 = vcmp.le.s32.totalorder %v2068, %v2032
    %vm2085 = vcmp.le.s32.totalorder %v2069, %v2032
    %vm2086 = vcmp.le.s32.totalorder %v2070, %v2032
    %vm2087 = vcmp.le.s32.totalorder %v2071, %v2032
    %vm2088 = vcmp.le.s32.totalorder %v2072, %v2032
    %vm2089 = vcmp.le.s32.totalorder %v2073, %v2032
    %vm2090 = vcmp.le.s32.totalorder %v2074, %v2032
    %vm2091 = vcmp.le.s32.totalorder %v2075, %v2032
    %vm2092 = vcmp.le.s32.totalorder %v2076, %v2032
    %vm2093 = vcmp.le.s32.totalorder %v2077, %v2032
    %vm2094 = vcmp.le.s32.totalorder %v2078, %v2032
    %vm2095 = vcmp.le.s32.totalorder %v2079, %v2032
    %v2096 = vsel %vm2080, 1, 0
    %v2097 = vsel %vm2081, 1, 0
    %v2098 = vsel %vm2082, 1, 0
    %v2099 = vsel %vm2083, 1, 0
    %v2100 = vsel %vm2084, 1, 0
    %v2101 = vsel %vm2085, 1, 0
    %v2102 = vsel %vm2086, 1, 0
    %v2103 = vsel %vm2087, 1, 0
    %v2104 = vsel %vm2088, 1, 0
    %v2105 = vsel %vm2089, 1, 0
    %v2106 = vsel %vm2090, 1, 0
    %v2107 = vsel %vm2091, 1, 0
    %v2108 = vsel %vm2092, 1, 0
    %v2109 = vsel %vm2093, 1, 0
    %v2110 = vsel %vm2094, 1, 0
    %v2111 = vsel %vm2095, 1, 0
    %v2112 = vcvt.s32.f32 %v2096
    %v2113 = vcvt.s32.f32 %v2097
    %v2114 = vcvt.s32.f32 %v2098
    %v2115 = vcvt.s32.f32 %v2099
    %v2116 = vcvt.s32.f32 %v2100
    %v2117 = vcvt.s32.f32 %v2101
    %v2118 = vcvt.s32.f32 %v2102
    %v2119 = vcvt.s32.f32 %v2103
    %v2120 = vcvt.s32.f32 %v2104
    %v2121 = vcvt.s32.f32 %v2105
    %v2122 = vcvt.s32.f32 %v2106
    %v2123 = vcvt.s32.f32 %v2107
    %v2124 = vcvt.s32.f32 %v2108
    %v2125 = vcvt.s32.f32 %v2109
    %v2126 = vcvt.s32.f32 %v2110
    %v2127 = vcvt.s32.f32 %v2111
    %2128 = vmatprep.subr.mxu0 0.0
    %2129 = vmatpush1.msra.mxu0 %v2112
    %2130 = vmatprep.subr.mxu0 0.0
    %2131 = vmatpush1.msra.mxu0 %v2113
    %2132 = vmatprep.subr.mxu0 0.0
    %2133 = vmatpush1.msra.mxu0 %v2114
    %2134 = vmatprep.subr.mxu0 0.0
    %2135 = vmatpush1.msra.mxu0 %v2115
    %2136 = vmatprep.subr.mxu0 0.0
    %2137 = vmatpush1.msra.mxu0 %v2116
    %2138 = vmatprep.subr.mxu0 0.0
    %2139 = vmatpush1.msra.mxu0 %v2117
    %2140 = vmatprep.subr.mxu0 0.0
    %2141 = vmatpush1.msra.mxu0 %v2118
    %2142 = vmatprep.subr.mxu0 0.0
    %2143 = vmatpush1.msra.mxu0 %v2119
    %2144 = vmatprep.subr.mxu0 0.0
    %2145 = vmatpush1.msra.mxu0 %v2120
    %2146 = vmatprep.subr.mxu0 0.0
    %2147 = vmatpush1.msra.mxu0 %v2121
    %2148 = vmatprep.subr.mxu0 0.0
    %2149 = vmatpush1.msra.mxu0 %v2122
    %2150 = vmatprep.subr.mxu0 0.0
    %2151 = vmatpush1.msra.mxu0 %v2123
    %2152 = vmatprep.subr.mxu0 0.0
    %2153 = vmatpush1.msra.mxu0 %v2124
    %2154 = vmatprep.subr.mxu0 0.0
    %2155 = vmatpush1.msra.mxu0 %v2125
    %2156 = vmatprep.subr.mxu0 0.0
    %2157 = vmatpush1.msra.mxu0 %v2126
    %2158 = vmatprep.subr.mxu0 0.0
    %2159 = vmatpush1.msra.mxu0 %v2127
    %2160 = vmatprep.subr.mxu0 0.0
    %2161 = vmatpush1.msra.mxu0 0.0
    %2162 = vmatprep.subr.mxu0 0.0
    %2163 = vmatpush1.msra.mxu0 0.0
    %2164 = vmatprep.subr.mxu0 0.0
    %2165 = vmatpush1.msra.mxu0 0.0
    %2166 = vmatprep.subr.mxu0 0.0
    %2167 = vmatpush1.msra.mxu0 0.0
    %2168 = vmatprep.subr.mxu0 0.0
    %2169 = vmatpush1.msra.mxu0 0.0
    %2170 = vmatprep.subr.mxu0 0.0
    %2171 = vmatpush1.msra.mxu0 0.0
    %2172 = vmatprep.subr.mxu0 0.0
    %2173 = vmatpush1.msra.mxu0 0.0
    %2174 = vmatprep.subr.mxu0 0.0
    %2175 = vmatpush1.msra.mxu0 0.0
    %2176 = vmatprep.subr.mxu0 0.0
    %2177 = vmatpush1.msra.mxu0 0.0
    %2178 = vmatprep.subr.mxu0 0.0
    %2179 = vmatpush1.msra.mxu0 0.0
    %2180 = vmatprep.subr.mxu0 0.0
    %2181 = vmatpush1.msra.mxu0 0.0
    %2182 = vmatprep.subr.mxu0 0.0
    %2183 = vmatpush1.msra.mxu0 0.0
    %2184 = vmatprep.subr.mxu0 0.0
    %2185 = vmatpush1.msra.mxu0 0.0
    %2186 = vmatprep.subr.mxu0 0.0
    %2187 = vmatpush1.msra.mxu0 0.0
    %2188 = vmatprep.subr.mxu0 0.0
    %2189 = vmatpush1.msra.mxu0 0.0
    %2190 = vmatprep.subr.mxu0 0.0
    %2191 = vmatpush1.msra.mxu0 0.0
    %2192 = vmatprep.mubr.f32.mxu0 0.0
    %2193 = vmatmul.mubr.f32.gmra.mrb[0].mxu0 %v2043
    %v2194 = vpop.f32.mrb[0].mxu0
    %v2195 = vadd.f32 0.0, %v2194
    %v2196 = vpop.f32.mrb[0].mxu0
    %2197 = vdwg.mxu0
    %v2198 = vld [vmem:[%s9] sm:$0xff]
    %2200 = vset.pattern.permute.xlu0 0
    %2201 = vperm.xlu0 %2200, %v2198
    %v2202 = vpop.permute.xlu0 %2201
    %vm2204 = vcmp.lt.f32.partialorder %v2195, %v2202
    %v2205 = vsel %vm2204, 1, 0
    %v2206 = vand.u32 %v2205, 65535
    %v2207 = vshrl.u32 %v2205, 16
    %v2208 = vcvt.s32.f32 %v2206
    %v2209 = vcvt.s32.f32 %v2207
    %2210 = vadd.xlane.f32.xlu0 %v2208
    %v2211 = vpop.xlane.xlu0 %2210
    %2212 = vadd.xlane.f32.xlu0 %v2209
    %v2213 = vpop.xlane.xlu0 %2212
    %v2214 = vcvt.f32.s32 %v2211
    %v2215 = vcvt.f32.s32 %v2213
    %v2216 = vshll.u32 %v2215, 16
    %v2217 = vadd.s32 %v2216, %v2214
    %vm2218 = vcmp.lt.s32.totalorder %v2217, 4
    %v2219 = vsel %vm2218, %v2217, 4
    %vm2220 = vcmask 39936
    %2221 = vst.msk [vmem:[#allocation10] sm:$0xff] %vm2220, %v2030
    %vm2222 = vcmask 7168
    %2223 = vst.msk [vmem:[%s11] sm:$0xff] %vm2222, %v2059
    %2224 = vst.msk [vmem:[%s12] sm:$0xff] %vm2222, %v2062
    %2225 = vst.msk [vmem:[%s13] sm:$0xff] %vm2222, %v2219
    %2227 = vrot.lane.b32.xlu0 %v2030, 123
    %v2228 = vpop.permute.xlu0 %2227
    %2230 = vst.msk [vmem:[%s14] sm:$0xff] %vm2222, %v2228
    // Predicated region
    $region58: #{tpu_custom_call.1} parent=1 // pred_check
      _
    $region59: #{tpu_custom_call.1} parent=1 // pred_check_branch
      %2232 = sbr.rel (0) target = $region61
    $region60: #{tpu_custom_call.1} parent=1 // pred_region
      %s2234 = ssub.s32 128, 128
      %2235 = vsyncadd [#allocation4], %s2234
      %s2237 = sshll.u32 [#allocation10], 4
      %s2238 = int_to_ptr.vmem [resolvable:$true] %s2237
      %2240 = dma.vmem_to_hbm [thread:$0]  %s2238, 128, %s10, [#allocation4]
    $region61: #{tpu_custom_call.1} parent=1 // pred_fallthru
      _
    // Predicated region
    $region62: #{tpu_custom_call.1} parent=1 // pred_check
      _
    $region63: #{tpu_custom_call.1} parent=1 // pred_check_branch
      %2242 = sbr.rel (0) target = $region65
    $region64: #{tpu_custom_call.1} parent=1 // pred_region
      _
    $region65: #{tpu_custom_call.1} parent=1 // pred_fallthru
      _
    // Predicated region
    $region66: #{tpu_custom_call.1} parent=1 // pred_check
      _
    $region67: #{tpu_custom_call.1} parent=1 // pred_check_branch
      %2244 = sbr.rel (0) target = $region69
    $region68: #{tpu_custom_call.1} parent=1 // pred_region
      _
    $region69: #{tpu_custom_call.1} parent=1 // pred_fallthru
      _
    // Predicated region
    $region70: #{tpu_custom_call.1} parent=1 // pred_check
      _
    $region71: #{tpu_custom_call.1} parent=1 // pred_check_branch
      %2246 = sbr.rel (0) target = $region73
    $region72: #{tpu_custom_call.1} parent=1 // pred_region
      _
    $region73: #{tpu_custom_call.1} parent=1 // pred_fallthru
      _
    // Predicated region
    $region74: #{tpu_custom_call.1} parent=1 // pred_check
      _
    $region75: #{tpu_custom_call.1} parent=1 // pred_check_branch
      %2248 = sbr.rel (0) target = $region77
    $region76: #{tpu_custom_call.1} parent=1 // pred_region
      _
    $region77: #{tpu_custom_call.1} parent=1 // pred_fallthru
      _
    // Predicated region
    $region78: #{tpu_custom_call.1} parent=1 // pred_check
      _
    $region79: #{tpu_custom_call.1} parent=1 // pred_check_branch
      %2250 = sbr.rel (0) target = $region81
    $region80: #{tpu_custom_call.1} parent=1 // pred_region
      %2251 = dma.done [#allocation4], 128
    $region81: #{tpu_custom_call.1} parent=1 // pred_fallthru
      _
    // Predicated region
    $region82: #{tpu_custom_call.1} parent=1 // pred_check
      _
    $region83: #{tpu_custom_call.1} parent=1 // pred_check_branch
      %2253 = sbr.rel (0) target = $region85
    $region84: #{tpu_custom_call.1} parent=1 // pred_region
      _
    $region85: #{tpu_custom_call.1} parent=1 // pred_fallthru
      _
    // Predicated region
    $region86: #{tpu_custom_call.1} parent=1 // pred_check
      _
    $region87: #{tpu_custom_call.1} parent=1 // pred_check_branch
      %2255 = sbr.rel (0) target = $region89
    $region88: #{tpu_custom_call.1} parent=1 // pred_region
      _
    $region89: #{tpu_custom_call.1} parent=1 // pred_fallthru
      _
    // Predicated region
    $region90: #{tpu_custom_call.1} parent=1 // pred_check
      _
    $region91: #{tpu_custom_call.1} parent=1 // pred_check_branch
      %2257 = sbr.rel (0) target = $region93
    $region92: #{tpu_custom_call.1} parent=1 // pred_region
      _
    $region93: #{tpu_custom_call.1} parent=1 // pred_fallthru
      _
    // Predicated region
    $region94: #{tpu_custom_call.1} parent=1 // pred_check
      _
    $region95: #{tpu_custom_call.1} parent=1 // pred_check_branch
      %2259 = sbr.rel (0) target = $region97
    $region96: #{tpu_custom_call.1} parent=1 // pred_region
      _
    $region97: #{tpu_custom_call.1} parent=1 // pred_fallthru
      _
    %2260 = vsyncpa [#allocation3], 1
    %2261 = vsyncpa [#allocation6], 1
    %2262 = vsyncpa [#allocation9], 1
    %2263 = vsyncpa [#allocation4], 1

</llo_original>
